<compile_context>
chip_gen: v7x
topology: tpu7x:2x2x1
jax: 0.10.0
libtpu: 0.0.40
codegen_flags: <defaults>
</compile_context>

<pallas_src>
import functools

import jax
import jax.numpy as jnp
from jax.experimental import pallas as pl
from jax.experimental.pallas import tpu as pltpu


# ------------------------------ fused kernel -------------------------------

def _fused_gcn_kernel(num_layers, tm, n_pad,
                      adj_hbm, xw0_hbm, w_ref, scale_ref, shift_ref, p_ref,
                      out_ref,
                      adj_vmem, h_ref, xw_ref, dma_sem):
    """Grid = (layer l, row-tile i); strictly sequential ("arbitrary").

    Scratch:
      adj_vmem (Np, Np) bf16  normalized adjacency, resident for all layers.
      h_ref    (Np, Fp) bf16  current layer input (rewritten per row tile).
      xw_ref   (Np, Fp) bf16  H @ W for the current layer (layer 0: DMA'd XW0).
    """
    l = pl.program_id(0)
    i = pl.program_id(1)
    last_layer = num_layers - 1
    n_chunks = n_pad // tm

    # ---- one-shot residency load at the very first grid step. -------------
    @pl.when((l == 0) & (i == 0))
    def _load_resident():
        adj_cp = pltpu.make_async_copy(adj_hbm, adj_vmem, dma_sem.at[0])
        xw_cp = pltpu.make_async_copy(xw0_hbm, xw_ref, dma_sem.at[1])
        adj_cp.start()
        xw_cp.start()
        adj_cp.wait()
        xw_cp.wait()

    # ---- layer prologue (layers >= 1): XW = H @ W_l, once per layer. ------
    @pl.when((l > 0) & (i == 0))
    def _compute_xw():
        def _chunk(c, carry):
            off = pl.multiple_of(c * tm, tm)
            xw_ref[pl.ds(off, tm), :] = jnp.dot(
                h_ref[pl.ds(off, tm), :], w_ref[...],
                preferred_element_type=jnp.float32).astype(xw_ref.dtype)
            return carry
        jax.lax.fori_loop(0, n_chunks, _chunk, 0, unroll=n_chunks <= 8)

    # ---- full-K message passing for this row tile: Ahat[i, :] @ XW. -------
    roff = pl.multiple_of(i * tm, tm)
    msg = jnp.dot(adj_vmem[pl.ds(roff, tm), :], xw_ref[...],
                  preferred_element_type=jnp.float32)
    # Folded bias + eval BatchNorm: scale * (Ahat @ XW) + shift.
    h = msg * scale_ref[...] + shift_ref[...]

    @pl.when(l < last_layer)
    def _store_hidden():
        h_ref[pl.ds(roff, tm), :] = jnp.maximum(h, 0.0).astype(h_ref.dtype)
        # TODO(synk): training-mode dropout would go here; eval = identity.

    @pl.when(l == last_layer)
    def _pool():
        # out_ref is the (Gp, Fp) mean-pool accumulator; it is only touched on
        # the last layer and zeroed at its first row tile.  NOTE: correctness
        # relies on the strictly sequential ("arbitrary") grid.
        @pl.when(i == 0)
        def _():
            out_ref[...] = jnp.zeros_like(out_ref)
        out_ref[...] += jnp.dot(p_ref[:, pl.ds(roff, tm)],
                                h.astype(p_ref.dtype),
                                preferred_element_type=jnp.float32)


# --------------------------------- wrapper ----------------------------------

def _round_up(v, m):
    return -(-v // m) * m


def gcn_graph_forward(x, edge_index, batch, convs, bns, num_graphs,
                      *, eps=1e-5, compute_dtype=jnp.bfloat16, tm=256):
    n, in_dim = x.shape
    hidden = convs[-1][0].shape[1]
    num_layers = len(convs)
    fp = _round_up(max(in_dim, hidden, 128), 128)
    tm = min(tm, _round_up(n, 128))
    assert tm % 128 == 0
    n_pad = _round_up(n, tm)
    gp = _round_up(num_graphs, 8)
    cd = compute_dtype
    cd_size = jnp.dtype(cd).itemsize

    # ---- JAX glue (graph-structure scatter, parameter folding; not hot) ----
    adj = build_normalized_adj(edge_index, n)              # (N, N) f32
    pool = build_pool_matrix(batch, num_graphs, n)         # (G, N) f32

    # Zero-pad nodes/graphs; padded rows/cols carry no edges and no pool mass,
    # so they never contaminate real outputs.
    adj_pad = (jnp.zeros((n_pad, n_pad), jnp.float32)
               .at[:n, :n].set(adj).astype(cd))
    pool_pad = (jnp.zeros((gp, n_pad), jnp.float32)
                .at[:num_graphs, :n].set(pool).astype(cd))

    # Fold bias + BatchNorm (eval) into per-layer scale/shift; pad to Fp lanes.
    w_stack, scale_stack, shift_stack = [], [], []
    for layer, (w, b) in enumerate(convs):
        if layer < num_layers - 1:
            gamma, beta, mean, var = bns[layer]
            scale = gamma * jax.lax.rsqrt(var + eps)
            shift = (b - mean) * scale + beta
        else:
            scale = jnp.ones_like(b)
            shift = b
        w_stack.append(jnp.zeros((fp, fp), jnp.float32)
                       .at[:w.shape[0], :w.shape[1]].set(w))
        scale_stack.append(jnp.zeros((fp,), jnp.float32)
                           .at[:scale.shape[0]].set(scale))
        shift_stack.append(jnp.zeros((fp,), jnp.float32)
                           .at[:shift.shape[0]].set(shift))
    w_stack = jnp.stack(w_stack).astype(cd)                   # (L, Fp, Fp)
    scale_stack = jnp.stack(scale_stack)[:, None, :]          # (L, 1, Fp) f32
    shift_stack = jnp.stack(shift_stack)[:, None, :]          # (L, 1, Fp) f32

    # XW0 precomputed outside the kernel (same bf16-operand / f32-acc math the
    # kernel uses for later layers) -> X never occupies VMEM.
    x_pad = (jnp.zeros((n_pad, fp), jnp.float32)
             .at[:n, :in_dim].set(x).astype(cd))
    xw0 = jnp.dot(x_pad, w_stack[0],
                  preferred_element_type=jnp.float32).astype(cd)  # (Np, Fp)

    # ---- VMEM budget / limit from the actual buffers ----
    vmem_need = (n_pad * n_pad * cd_size          # resident Ahat scratch
                 + 2 * n_pad * fp * cd_size       # H + XW scratch
                 + 2 * fp * fp * cd_size          # W (double-buffered)
                 + 2 * 2 * fp * 4                 # scale + shift (dbl-buffered)
                 + 2 * gp * n_pad * cd_size       # pool matrix (dbl-buffered)
                 + 2 * gp * fp * 4)               # output accumulator
    try:
        vmem_cap = int(pltpu.get_tpu_info().vmem_capacity_bytes * 0.85)
    except Exception:
        vmem_cap = 56 * 1024 * 1024               # safe on v5e / v6e / v7x
    if vmem_need > vmem_cap:
        # TODO(synk): streamed / block-sparse adjacency path for large graphs.
        raise ValueError(
            f"dense Ahat ({n_pad}x{n_pad}) + scratch needs {vmem_need} B VMEM "
            f"(cap {vmem_cap} B); the VMEM-resident path does not fit.")
    vmem_limit = int(min(max(vmem_need * 1.25 + (2 << 20), 16 << 20), vmem_cap))

    grid = (num_layers, n_pad // tm)
    flops = (num_layers * (2 * n_pad * fp * fp + 2 * n_pad * n_pad * fp)
             + 2 * gp * n_pad * fp)
    bytes_accessed = (n_pad * n_pad * cd_size + n_pad * fp * cd_size
                      + num_layers * (fp * fp * cd_size + 2 * fp * 4)
                      + gp * n_pad * cd_size + gp * fp * 4)

    out_pad = pl.pallas_call(
        functools.partial(_fused_gcn_kernel, num_layers, tm, n_pad),
        out_shape=jax.ShapeDtypeStruct((gp, fp), jnp.float32),
        grid_spec=pltpu.PrefetchScalarGridSpec(
            num_scalar_prefetch=0,
            grid=grid,
            in_specs=[
                pl.BlockSpec(memory_space=pl.ANY),                     # Ahat (HBM)
                pl.BlockSpec(memory_space=pl.ANY),                     # XW0  (HBM)
                pl.BlockSpec((None, fp, fp), lambda l, i: (l, 0, 0)),  # W_l
                pl.BlockSpec((None, 1, fp), lambda l, i: (l, 0, 0)),   # scale_l
                pl.BlockSpec((None, 1, fp), lambda l, i: (l, 0, 0)),   # shift_l
                pl.BlockSpec((gp, n_pad), lambda l, i: (0, 0)),        # P (resident)
            ],
            out_specs=pl.BlockSpec((gp, fp), lambda l, i: (0, 0)),
            scratch_shapes=[
                pltpu.VMEM((n_pad, n_pad), cd),   # resident Ahat
                pltpu.VMEM((n_pad, fp), cd),      # H  (resident across layers)
                pltpu.VMEM((n_pad, fp), cd),      # XW (per layer)
                pltpu.SemaphoreType.DMA((2,)),    # one-shot residency DMAs
            ],
        ),
        compiler_params=pltpu.CompilerParams(
            # Strictly sequential across layers and through the shared H/XW
            # scratch -> both axes must stay "arbitrary" (see header).
            dimension_semantics=("arbitrary", "arbitrary"),
            vmem_limit_bytes=vmem_limit,
        ),
        cost_estimate=pl.CostEstimate(flops=flops, transcendentals=0,
                                      bytes_accessed=bytes_accessed),
    )(adj_pad, xw0, w_stack, scale_stack, shift_stack, pool_pad)

    return out_pad[:num_graphs, :hidden]


# --------------------------- graph-structure glue ---------------------------

def build_normalized_adj(edge_index, num_nodes):
    """Dense D^-1/2 (A + I) D^-1/2 matching PyG GCNConv's gcn_norm.

    Duplicate edges are scatter-added (as in PyG); weight-1 self-loops are added
    only for nodes that do not already have one (add_remaining_self_loops).
    """
    src, dst = edge_index[0], edge_index[1]
    a = jnp.zeros((num_nodes, num_nodes), jnp.float32)
    a = a.at[dst, src].add(1.0)                      # messages flow src -> dst
    diag = jnp.diagonal(a)
    idx = jnp.arange(num_nodes)
    a = a.at[idx, idx].set(jnp.where(diag > 0, diag, 1.0))
    deg = a.sum(axis=1)
    dinv = jnp.where(deg > 0, jax.lax.rsqrt(deg), 0.0)
    return dinv[:, None] * a * dinv[None, :]


def build_pool_matrix(batch, num_graphs, num_nodes):
    onehot = (batch[None, :] == jnp.arange(num_graphs)[:, None]).astype(jnp.float32)
    counts = jnp.maximum(onehot.sum(axis=1, keepdims=True), 1.0)
    return onehot / counts


# ------------------------------- parameters ---------------------------------

def make_params(key, input_dim, hidden_dim, num_layers):
    """GCN(input_dim, hidden_dim, hidden_dim, num_layers) parameters."""
    dims = [input_dim] + [hidden_dim] * num_layers
    convs, bns = [], []
    keys = jax.random.split(key, num_layers * 2 + (num_layers - 1) * 2)
    ki = 0
    for layer in range(num_layers):
        fan_in, fan_out = dims[layer], dims[layer + 1]
        scale = jnp.sqrt(6.0 / (fan_in + fan_out))
        w = jax.random.uniform(keys[ki], (fan_in, fan_out), jnp.float32,
                               -scale, scale); ki += 1
        b = 0.01 * jax.random.normal(keys[ki], (fan_out,), jnp.float32); ki += 1
        convs.append((w, b))
    for _ in range(num_layers - 1):
        gamma = 1.0 + 0.05 * jax.random.normal(keys[ki], (hidden_dim,),
                                               jnp.float32); ki += 1
        beta = 0.05 * jax.random.normal(keys[ki], (hidden_dim,),
                                        jnp.float32); ki += 1
        bns.append((gamma, beta,
                    jnp.zeros((hidden_dim,), jnp.float32),
                    jnp.ones((hidden_dim,), jnp.float32)))
    return convs, bns


# ----------------------------- pure-JAX references ---------------------------

def reference_forward_f32(x, edge_index, batch, convs, bns, num_graphs, eps=1e-5):
    """Full-precision semantics reference (mirrors the PyTorch eval forward)."""
    n = x.shape[0]
    adj = build_normalized_adj(edge_index, n)
    pool = build_pool_matrix(batch, num_graphs, n)
    h = x
    for layer in range(len(convs) - 1):
        w, b = convs[layer]
        gamma, beta, mean, var = bns[layer]
        h = adj @ (h @ w) + b
        h = gamma * (h - mean) / jnp.sqrt(var + eps) + beta
        h = jnp.maximum(h, 0.0)
    w, b = convs[-1]
    h = adj @ (h @ w) + b
    return pool @ h


def reference_forward_matched(x, edge_index, batch, convs, bns, num_graphs,
                              eps=1e-5, dt=jnp.bfloat16):
    """Same math with the kernel's bf16 operand casts (f32 accumulation)."""
    n = x.shape[0]
    adj = build_normalized_adj(edge_index, n).astype(dt)
    pool = build_pool_matrix(batch, num_graphs, n).astype(dt)
    num_layers = len(convs)
    h = x.astype(dt)
    hf = None
    for layer, (w, b) in enumerate(convs):
        xw = jnp.dot(h, w.astype(dt),
                     preferred_element_type=jnp.float32).astype(dt)
        msg = jnp.dot(adj, xw, preferred_element_type=jnp.float32)
        if layer < num_layers - 1:
            gamma, beta, mean, var = bns[layer]
            scale = gamma * jax.lax.rsqrt(var + eps)
            shift = (b - mean) * scale + beta
            hf = jnp.maximum(msg * scale + shift, 0.0)
        else:
            hf = msg + b
        h = hf.astype(dt)
    return jnp.dot(pool, hf.astype(dt), preferred_element_type=jnp.float32)


# ----------------------------------- main ------------------------------------

if __name__ == "__main__":
    key = jax.random.PRNGKey(0)
    k_x, k_e, k_p = jax.random.split(key, 3)

    N = 512           # total nodes in the batched graph (2 row tiles at tm=256)
    E = 2048          # directed edges
    G = 8             # graphs in the batch
    INPUT_DIM = 32
    HIDDEN_DIM = 64
    NUM_LAYERS = 3
    DROPOUT = 0.5     # identity at eval time

    x = jax.random.normal(k_x, (N, INPUT_DIM), jnp.float32)
    edge_index = jax.random.randint(k_e, (2, E), 0, N, jnp.int32)
    batch = jnp.repeat(jnp.arange(G, dtype=jnp.int32), N // G)

    convs, bns = make_params(k_p, INPUT_DIM, HIDDEN_DIM, NUM_LAYERS)

    out = gcn_graph_forward(x, edge_index, batch, convs, bns, G)
    out = jax.block_until_ready(out)
    assert out.shape == (G, HIDDEN_DIM)

    # Tight-ish check vs a reference using the same bf16 operand casts.
    ref_bf16 = reference_forward_matched(x, edge_index, batch, convs, bns, G)
    assert jnp.allclose(out, ref_bf16, atol=1e-2, rtol=1e-2), (
        f"max abs err vs bf16-matched reference: "
        f"{jnp.max(jnp.abs(out - ref_bf16))}")

    # Looser sanity check vs the full-precision semantics reference.
    ref_f32 = reference_forward_f32(x, edge_index, batch, convs, bns, G)
    assert jnp.allclose(out, ref_f32, atol=1e-1, rtol=1e-1), (
        f"max abs err vs f32 reference: {jnp.max(jnp.abs(out - ref_f32))}")

    print("KERNEL_OK")
</pallas_src>

<mosaic_0001>
module attributes {stable_mosaic.version = 11 : i64} {
  func.func @_fused_gcn_kernel(%arg0: i32, %arg1: i32, %arg2: memref<512x512xbf16, #tpu.memory_space<any>>, %arg3: memref<512x128xbf16, #tpu.memory_space<any>>, %arg4: memref<1x128x128xbf16, #tpu.memory_space<vmem>>, %arg5: memref<1x1x128xf32, #tpu.memory_space<vmem>>, %arg6: memref<1x1x128xf32, #tpu.memory_space<vmem>>, %arg7: memref<8x512xbf16, #tpu.memory_space<vmem>>, %arg8: memref<8x128xf32, #tpu.memory_space<vmem>>, %arg9: memref<512x512xbf16, #tpu.memory_space<vmem>>, %arg10: memref<512x128xbf16, #tpu.memory_space<vmem>>, %arg11: memref<512x128xbf16, #tpu.memory_space<vmem>>, %arg12: memref<2x!tpu.dma_semaphore, #tpu.memory_space<semaphore_mem>>) attributes {dimension_semantics = [#tpu.dimension_semantics<arbitrary>, #tpu.dimension_semantics<arbitrary>], iteration_bounds = array<i64: 3, 2>, scalar_prefetch = 0 : i64, scratch_operands = 4 : i64, tpu.core_type = #tpu.core_type<tc>, window_params = [{}, {}, {transform_indices = @transform_2, window_bounds = array<i64: 1, 128, 128>}, {transform_indices = @transform_3, window_bounds = array<i64: 1, 1, 128>}, {transform_indices = @transform_4, window_bounds = array<i64: 1, 1, 128>}, {pipeline_mode = #tpu.pipeline_mode<synchronous>, transform_indices = @transform_5, window_bounds = array<i64: 8, 512>}, {pipeline_mode = #tpu.pipeline_mode<synchronous>, transform_indices = @transform_6, window_bounds = array<i64: 8, 128>}]} {
    %c0_i32 = arith.constant 0 : i32
    %0 = arith.cmpi eq, %arg0, %c0_i32 : i32
    %c0_i32_0 = arith.constant 0 : i32
    %1 = arith.cmpi eq, %arg1, %c0_i32_0 : i32
    %2 = arith.andi %0, %1 : i1
    %3 = arith.extui %2 : i1 to i32
    %c0_i32_1 = arith.constant 0 : i32
    %4 = arith.cmpi ne, %3, %c0_i32_1 : i32
    scf.if %4 {
      %c0_i32_16 = arith.constant 0 : i32
      %30 = tpu.memref_slice %arg12[%c0_i32_16] : memref<2x!tpu.dma_semaphore, #tpu.memory_space<semaphore_mem>> -> memref<1x!tpu.dma_semaphore, #tpu.memory_space<semaphore_mem>>
      %31 = tpu.memref_squeeze %30 : memref<1x!tpu.dma_semaphore, #tpu.memory_space<semaphore_mem>> -> memref<!tpu.dma_semaphore, #tpu.memory_space<semaphore_mem>>
      tpu.enqueue_dma source(%arg2 : memref<512x512xbf16, #tpu.memory_space<any>>) target(%arg9 : memref<512x512xbf16, #tpu.memory_space<vmem>>) target_semaphore(%31 : memref<!tpu.dma_semaphore, #tpu.memory_space<semaphore_mem>>)
      %c1_i32 = arith.constant 1 : i32
      %32 = tpu.memref_slice %arg12[%c1_i32] : memref<2x!tpu.dma_semaphore, #tpu.memory_space<semaphore_mem>> -> memref<1x!tpu.dma_semaphore, #tpu.memory_space<semaphore_mem>>
      %33 = tpu.memref_squeeze %32 : memref<1x!tpu.dma_semaphore, #tpu.memory_space<semaphore_mem>> -> memref<!tpu.dma_semaphore, #tpu.memory_space<semaphore_mem>>
      tpu.enqueue_dma source(%arg3 : memref<512x128xbf16, #tpu.memory_space<any>>) target(%arg11 : memref<512x128xbf16, #tpu.memory_space<vmem>>) target_semaphore(%33 : memref<!tpu.dma_semaphore, #tpu.memory_space<semaphore_mem>>)
      %c0_i32_17 = arith.constant 0 : i32
      %34 = tpu.memref_slice %arg12[%c0_i32_17] : memref<2x!tpu.dma_semaphore, #tpu.memory_space<semaphore_mem>> -> memref<1x!tpu.dma_semaphore, #tpu.memory_space<semaphore_mem>>
      %35 = tpu.memref_squeeze %34 : memref<1x!tpu.dma_semaphore, #tpu.memory_space<semaphore_mem>> -> memref<!tpu.dma_semaphore, #tpu.memory_space<semaphore_mem>>
      tpu.wait_dma2 semaphore(%35 : memref<!tpu.dma_semaphore, #tpu.memory_space<semaphore_mem>>) src(%arg2 : memref<512x512xbf16, #tpu.memory_space<any>>) dst(%arg9 : memref<512x512xbf16, #tpu.memory_space<vmem>>)
      %c1_i32_18 = arith.constant 1 : i32
      %36 = tpu.memref_slice %arg12[%c1_i32_18] : memref<2x!tpu.dma_semaphore, #tpu.memory_space<semaphore_mem>> -> memref<1x!tpu.dma_semaphore, #tpu.memory_space<semaphore_mem>>
      %37 = tpu.memref_squeeze %36 : memref<1x!tpu.dma_semaphore, #tpu.memory_space<semaphore_mem>> -> memref<!tpu.dma_semaphore, #tpu.memory_space<semaphore_mem>>
      tpu.wait_dma2 semaphore(%37 : memref<!tpu.dma_semaphore, #tpu.memory_space<semaphore_mem>>) src(%arg3 : memref<512x128xbf16, #tpu.memory_space<any>>) dst(%arg11 : memref<512x128xbf16, #tpu.memory_space<vmem>>)
    } else {
    }
    %c0_i32_2 = arith.constant 0 : i32
    %5 = arith.cmpi sgt, %arg0, %c0_i32_2 : i32
    %c0_i32_3 = arith.constant 0 : i32
    %6 = arith.cmpi eq, %arg1, %c0_i32_3 : i32
    %7 = arith.andi %5, %6 : i1
    %8 = arith.extui %7 : i1 to i32
    %c0_i32_4 = arith.constant 0 : i32
    %9 = arith.cmpi ne, %8, %c0_i32_4 : i32
    scf.if %9 {
      %c0_i32_16 = arith.constant 0 : i32
      %c256_i32_17 = arith.constant 256 : i32
      %30 = arith.muli %c0_i32_16, %c256_i32_17 : i32
      %31 = tpu.assume_multiple %30, 256 : i32
      %32 = arith.index_cast %31 : i32 to index
      %c0_18 = arith.constant 0 : index
      %33 = vector.load %arg10[%32, %c0_18] : memref<512x128xbf16, #tpu.memory_space<vmem>>, vector<256x128xbf16>
      %c0_19 = arith.constant 0 : index
      %c0_20 = arith.constant 0 : index
      %c0_21 = arith.constant 0 : index
      %34 = vector.load %arg4[%c0_19, %c0_20, %c0_21] : memref<1x128x128xbf16, #tpu.memory_space<vmem>>, vector<1x128x128xbf16>
      %35 = vector.shape_cast %34 : vector<1x128x128xbf16> to vector<128x128xbf16>
      %cst_22 = arith.constant dense<0.000000e+00> : vector<256x128xf32>
      %36 = tpu.matmul %33, %35, %cst_22 {dimension_numbers = #tpu.dot_dimension_numbers<[1], [0], [0], [1], [0, 0, 1, 1], [], []>} : vector<256x128xbf16>, vector<128x128xbf16>, vector<256x128xf32> -> vector<256x128xf32>
      %37 = arith.truncf %36 : vector<256x128xf32> to vector<256x128xbf16>
      %38 = arith.index_cast %31 : i32 to index
      %c0_23 = arith.constant 0 : index
      %39 = vector.load %arg11[%38, %c0_23] : memref<512x128xbf16, #tpu.memory_space<vmem>>, vector<256x128xbf16>
      tpu.vector_store %arg11[%38, %c0_23], %37 {strides = array<i32>} : memref<512x128xbf16, #tpu.memory_space<vmem>>, vector<256x128xbf16>,
      %c1_i32 = arith.constant 1 : i32
      %c256_i32_24 = arith.constant 256 : i32
      %40 = arith.muli %c1_i32, %c256_i32_24 : i32
      %41 = tpu.assume_multiple %40, 256 : i32
      %42 = arith.index_cast %41 : i32 to index
      %c0_25 = arith.constant 0 : index
      %43 = vector.load %arg10[%42, %c0_25] : memref<512x128xbf16, #tpu.memory_space<vmem>>, vector<256x128xbf16>
      %c0_26 = arith.constant 0 : index
      %c0_27 = arith.constant 0 : index
      %c0_28 = arith.constant 0 : index
      %44 = vector.load %arg4[%c0_26, %c0_27, %c0_28] : memref<1x128x128xbf16, #tpu.memory_space<vmem>>, vector<1x128x128xbf16>
      %45 = vector.shape_cast %44 : vector<1x128x128xbf16> to vector<128x128xbf16>
      %cst_29 = arith.constant dense<0.000000e+00> : vector<256x128xf32>
      %46 = tpu.matmul %43, %45, %cst_29 {dimension_numbers = #tpu.dot_dimension_numbers<[1], [0], [0], [1], [0, 0, 1, 1], [], []>} : vector<256x128xbf16>, vector<128x128xbf16>, vector<256x128xf32> -> vector<256x128xf32>
      %47 = arith.truncf %46 : vector<256x128xf32> to vector<256x128xbf16>
      %48 = arith.index_cast %41 : i32 to index
      %c0_30 = arith.constant 0 : index
      %49 = vector.load %arg11[%48, %c0_30] : memref<512x128xbf16, #tpu.memory_space<vmem>>, vector<256x128xbf16>
      tpu.vector_store %arg11[%48, %c0_30], %47 {strides = array<i32>} : memref<512x128xbf16, #tpu.memory_space<vmem>>, vector<256x128xbf16>,
      %c2_i32_31 = arith.constant 2 : i32
    } else {
    }
    %c256_i32 = arith.constant 256 : i32
    %10 = arith.muli %arg1, %c256_i32 : i32
    %11 = tpu.assume_multiple %10, 256 : i32
    %12 = arith.index_cast %11 : i32 to index
    %c0 = arith.constant 0 : index
    %13 = vector.load %arg9[%12, %c0] : memref<512x512xbf16, #tpu.memory_space<vmem>>, vector<256x512xbf16>
    %c0_5 = arith.constant 0 : index
    %c0_6 = arith.constant 0 : index
    %14 = vector.load %arg11[%c0_5, %c0_6] : memref<512x128xbf16, #tpu.memory_space<vmem>>, vector<512x128xbf16>
    %cst = arith.constant dense<0.000000e+00> : vector<256x128xf32>
    %15 = tpu.matmul %13, %14, %cst {dimension_numbers = #tpu.dot_dimension_numbers<[1], [0], [0], [1], [0, 0, 1, 1], [], []>} : vector<256x512xbf16>, vector<512x128xbf16>, vector<256x128xf32> -> vector<256x128xf32>
    %c0_7 = arith.constant 0 : index
    %c0_8 = arith.constant 0 : index
    %c0_9 = arith.constant 0 : index
    %16 = vector.load %arg5[%c0_7, %c0_8, %c0_9] : memref<1x1x128xf32, #tpu.memory_space<vmem>>, vector<1x1x128xf32>
    %17 = vector.shape_cast %16 : vector<1x1x128xf32> to vector<1x128xf32>
    %18 = vector.broadcast %17 : vector<1x128xf32> to vector<256x128xf32>
    %19 = arith.mulf %15, %18 : vector<256x128xf32>
    %c0_10 = arith.constant 0 : index
    %c0_11 = arith.constant 0 : index
    %c0_12 = arith.constant 0 : index
    %20 = vector.load %arg6[%c0_10, %c0_11, %c0_12] : memref<1x1x128xf32, #tpu.memory_space<vmem>>, vector<1x1x128xf32>
    %21 = vector.shape_cast %20 : vector<1x1x128xf32> to vector<1x128xf32>
    %22 = vector.broadcast %21 : vector<1x128xf32> to vector<256x128xf32>
    %23 = arith.addf %19, %22 : vector<256x128xf32>
    %c2_i32 = arith.constant 2 : i32
    %24 = arith.cmpi slt, %arg0, %c2_i32 : i32
    %25 = arith.extui %24 : i1 to i32
    %c0_i32_13 = arith.constant 0 : i32
    %26 = arith.cmpi ne, %25, %c0_i32_13 : i32
    scf.if %26 {
      %cst_16 = arith.constant 0.000000e+00 : f32
      %30 = vector.broadcast %cst_16 : f32 to vector<256x128xf32>
      %31 = arith.maximumf %23, %30 : vector<256x128xf32>
      %32 = arith.truncf %31 : vector<256x128xf32> to vector<256x128xbf16>
      %33 = arith.index_cast %11 : i32 to index
      %c0_17 = arith.constant 0 : index
      %34 = vector.load %arg10[%33, %c0_17] : memref<512x128xbf16, #tpu.memory_space<vmem>>, vector<256x128xbf16>
      tpu.vector_store %arg10[%33, %c0_17], %32 {strides = array<i32>} : memref<512x128xbf16, #tpu.memory_space<vmem>>, vector<256x128xbf16>,
    } else {
    }
    %c2_i32_14 = arith.constant 2 : i32
    %27 = arith.cmpi eq, %arg0, %c2_i32_14 : i32
    %28 = arith.extui %27 : i1 to i32
    %c0_i32_15 = arith.constant 0 : i32
    %29 = arith.cmpi ne, %28, %c0_i32_15 : i32
    scf.if %29 {
      %c0_i32_16 = arith.constant 0 : i32
      %30 = arith.cmpi eq, %arg1, %c0_i32_16 : i32
      %31 = arith.extui %30 : i1 to i32
      %c0_i32_17 = arith.constant 0 : i32
      %32 = arith.cmpi ne, %31, %c0_i32_17 : i32
      scf.if %32 {
        %cst_24 = arith.constant 0.000000e+00 : f32
        %40 = vector.broadcast %cst_24 : f32 to vector<8x128xf32>
        %c0_25 = arith.constant 0 : index
        %c0_26 = arith.constant 0 : index
        %41 = vector.load %arg8[%c0_25, %c0_26] : memref<8x128xf32, #tpu.memory_space<vmem>>, vector<8x128xf32>
        tpu.vector_store %arg8[%c0_25, %c0_26], %40 {strides = array<i32>} : memref<8x128xf32, #tpu.memory_space<vmem>>, vector<8x128xf32>,
      } else {
      }
      %c0_18 = arith.constant 0 : index
      %c0_19 = arith.constant 0 : index
      %33 = vector.load %arg8[%c0_18, %c0_19] : memref<8x128xf32, #tpu.memory_space<vmem>>, vector<8x128xf32>
      %c0_20 = arith.constant 0 : index
      %34 = arith.index_cast %11 : i32 to index
      %35 = vector.load %arg7[%c0_20, %34] : memref<8x512xbf16, #tpu.memory_space<vmem>>, vector<8x256xbf16>
      %36 = arith.truncf %23 : vector<256x128xf32> to vector<256x128xbf16>
      %cst_21 = arith.constant dense<0.000000e+00> : vector<8x128xf32>
      %37 = tpu.matmul %35, %36, %cst_21 {dimension_numbers = #tpu.dot_dimension_numbers<[1], [0], [0], [1], [0, 0, 1, 1], [], []>} : vector<8x256xbf16>, vector<256x128xbf16>, vector<8x128xf32> -> vector<8x128xf32>
      %38 = arith.addf %33, %37 : vector<8x128xf32>
      %c0_22 = arith.constant 0 : index
      %c0_23 = arith.constant 0 : index
      %39 = vector.load %arg8[%c0_22, %c0_23] : memref<8x128xf32, #tpu.memory_space<vmem>>, vector<8x128xf32>
      tpu.vector_store %arg8[%c0_22, %c0_23], %38 {strides = array<i32>} : memref<8x128xf32, #tpu.memory_space<vmem>>, vector<8x128xf32>,
    } else {
    }
    return
  }
  func.func @transform_2(%arg0: i32, %arg1: i32) -> (i32, i32, i32) {
    %c0_i32 = arith.constant 0 : i32
    %c0_i32_0 = arith.constant 0 : i32
    %c0_i32_1 = arith.constant 0 : i32
    return %arg0, %c0_i32, %c0_i32_0 : i32, i32, i32
  }
  func.func @transform_3(%arg0: i32, %arg1: i32) -> (i32, i32, i32) {
    %c0_i32 = arith.constant 0 : i32
    %c0_i32_0 = arith.constant 0 : i32
    %c0_i32_1 = arith.constant 0 : i32
    return %arg0, %c0_i32, %c0_i32_0 : i32, i32, i32
  }
  func.func @transform_4(%arg0: i32, %arg1: i32) -> (i32, i32, i32) {
    %c0_i32 = arith.constant 0 : i32
    %c0_i32_0 = arith.constant 0 : i32
    %c0_i32_1 = arith.constant 0 : i32
    return %arg0, %c0_i32, %c0_i32_0 : i32, i32, i32
  }
  func.func @transform_5(%arg0: i32, %arg1: i32) -> (i32, i32) {
    %c0_i32 = arith.constant 0 : i32
    %c0_i32_0 = arith.constant 0 : i32
    %c0_i32_1 = arith.constant 0 : i32
    return %c0_i32, %c0_i32_0 : i32, i32
  }
  func.func @transform_6(%arg0: i32, %arg1: i32) -> (i32, i32) {
    %c0_i32 = arith.constant 0 : i32
    %c0_i32_0 = arith.constant 0 : i32
    %c0_i32_1 = arith.constant 0 : i32
    return %c0_i32, %c0_i32_0 : i32, i32
  }
}

</mosaic_0001>

<llo_original>
// kernel: tpu_custom_call.1
$region0: #{tpu_custom_call.1}
  #allocation0 [shape = 'u32[]', space=smem, size = 0x4, offset = 0x4, fixed_abs, tag = 'smem constant byte address 0x4 - core index']
  #allocation1 [shape = 'u32[144,128]{1,0:T(1,128)}', space=vmem, size = 0x12000, scoped, tag = 'internal scratch']
  #allocation2 [shape = 'bf16[512,512]{1,0:T(16,128)(2,1)}', space=vmem, size = 0x80000, scoped, tag = 'scratch operand']
  #allocation3 [shape = 'bf16[512,128]{1,0:T(16,128)(2,1)}', space=vmem, size = 0x20000, scoped, tag = 'scratch operand']
  #allocation4 [shape = 'bf16[512,128]{1,0:T(16,128)(2,1)}', space=vmem, size = 0x20000, scoped, tag = 'scratch operand']
  #allocation5 [shape = 's32[2]{0}', space=sflag, size = 0x8, scoped, tag = 'scratch operand']
  #allocation13 [shape = 's32[]', space=sflag, size = 0x4, offset = 0, fixed_abs, tag = 'sflag constant byte address 0x0 - dummy sync flag']
  #allocation15 [shape = 's32[]', space=sflag, size = 0x4, offset = 0, fixed_abs, tag = 'sflag constant byte address 0x0 - dummy sync flag']
  #allocation16 [shape = 's32[]', space=sflag, size = 0x4, offset = 0, fixed_abs, tag = 'sflag constant byte address 0x0 - dummy sync flag']
  #allocation17 [shape = 'u32[]', space=smem, size = 0x4, offset = 0x44, fixed_abs, tag = 'smem constant byte address 0x44 - assertion arg 0']
  #allocation18 [shape = 'u32[]', space=smem, size = 0x4, offset = 0x48, fixed_abs, tag = 'smem constant byte address 0x48 - assertion arg 1']
  %s0 = inlined_call_operand.hbm [shape: bf16[512,512], index: 0, kind: input, shape index: {}]
  %s1 = inlined_call_operand.hbm [shape: bf16[512,128], index: 1, kind: input, shape index: {}]
  %s2 = inlined_call_operand.hbm [shape: bf16[3,128,128], index: 2, kind: input, shape index: {}]
  %s3 = inlined_call_operand.hbm [shape: f32[3,1,128], index: 3, kind: input, shape index: {}]
  %s4 = inlined_call_operand.hbm [shape: f32[3,1,128], index: 4, kind: input, shape index: {}]
  %s5 = inlined_call_operand.vmem [shape: bf16[8,512], index: 5, kind: input, shape index: {}]
  %s6 = inlined_call_operand.hbm [shape: f32[8,128], index: 6, kind: output, shape index: {}]
  %s7 = sld [smem:[#allocation0]]
  $region85: #{tpu_custom_call.1} parent=0
    _
  %s9 = ssub.s32 1, %s7
  %s10 = scalar_select 0, %s9, %s7
  $region1: #{tpu_custom_call.1} parent=0
    #allocation6 [shape = 'u8[65536]{0}', space=vmem, size = 0x10000, scoped, tag = 'input window, operand 2']
    #allocation7 [shape = 's32[2]{0}', space=sflag, size = 0x8, scoped, tag = 'scoped memory for tpu_custom_call.1']
    #allocation8 [shape = 's32[2]{0}', space=sflag, size = 0x8, scoped, tag = 'scoped memory for tpu_custom_call.1']
    #allocation9 [shape = 'u8[1024]{0}', space=vmem, size = 0x400, scoped, tag = 'input window, operand 3']
    #allocation10 [shape = 's32[2]{0}', space=sflag, size = 0x8, scoped, tag = 'scoped memory for tpu_custom_call.1']
    #allocation11 [shape = 'u8[1024]{0}', space=vmem, size = 0x400, scoped, tag = 'input window, operand 4']
    #allocation12 [shape = 'u8[4096]{0}', space=vmem, size = 0x1000, scoped, tag = 'output window, operand 0, single buffered']
    %11 = vsyncpa [#allocation7], 0
    %s12 = scalar_lea.sflag [#allocation7], 1
    %13 = vsyncpa %s12, 0
    %14 = vsyncpa [#allocation10], 0
    %s15 = scalar_lea.sflag [#allocation10], 1
    %16 = vsyncpa %s15, 0
    %17 = vsyncpa [#allocation8], 0
    loop: start=0, step=1, limit=8
    $region2: #{tpu_custom_call.1} parent=1 // loop_pre_header
      _
    $region3: #{tpu_custom_call.1} parent=1 // loop_header
      %s19 = sphi 0, %s23
      %p20 = scmp.ge.s32.totalorder %s19, 8
      %s26 = sphi 0, %s38
      %s27 = sphi 0, %s34
      %s28 = sphi 0, %s26
      %s29 = sphi 0, %s27
      %s30 = sphi 0, %s28
      %s31 = sphi 0, %s29
      %s41 = sphi 0, %s43
      %s44 = sphi 0, %s41
      %s45 = sphi 0, %s44
      %s61 = sphi 0, %s45
      %s67 = sphi 0, %s69
      %s70 = sphi 0, %s67
      %s71 = sphi 0, %s70
      %s87 = sphi 0, %s71
      %s93 = sphi 0, %s95
      %s96 = sphi 0, %s93
      %s97 = sphi 0, %s96
      %s113 = sphi 0, %s97
      %s117 = sphi 0, %s117
      %s119 = sphi 0, %s117
      %s120 = sphi 0, %s119
      %s134 = sphi 0, %s120
      %s138 = sphi 0, %s138
      %s140 = sphi 0, %s138
      %s141 = sphi 0, %s140
      %s155 = sphi 0, %s141
    $region4: #{tpu_custom_call.1} parent=1 // loop_header_branch
      %22 = sbr.rel (%p20) target = $region8
    $region5: #{tpu_custom_call.1} parent=1 // loop_body
      %s24 = ssub.s32 %s19, 1
      %s25 = ssub.s32 %s19, 2
      %s32 = sadd.s32 1, %s27
      %p33 = scmp.ge.s32.totalorder %s32, 2
      %s34 = scalar_select %p33, 0, %s32
      %s35 = sadd.s32 1, %s26
      %s36 = scalar_select %p33, %s35, %s26
      %p37 = scmp.ge.s32.totalorder %s36, 3
      %s38 = scalar_select %p37, 0, %s36
      %s39 = ssub.s32 %s26, %s38
      %p40 = scmp.eq.s32.totalorder %s39, 0
      %s42 = sadd.s32 %s41, 1
      %s43 = scalar_select %p40, %s41, %s42
      %p46 = pneg %p40
      %p47 = scmp.eq.s32.totalorder %s19, 5
      %p48 = por %p46, %p47
      %p49 = scmp.ne.s32.totalorder %s41, %s44
      %p50 = scmp.eq.s32.totalorder %s19, 0
      %p51 = por %p49, %p50
      %p52 = scmp.ne.s32.totalorder %s41, %s44
      %p53 = scmp.eq.s32.totalorder %s24, 5
      %p54 = por %p52, %p53
      %p55 = scmp.ne.s32.totalorder %s44, %s45
      %p56 = scmp.eq.s32.totalorder %s24, 0
      %p57 = por %p55, %p56
      %p58 = scmp.ne.s32.totalorder %s44, %s45
      %p59 = scmp.eq.s32.totalorder %s25, 5
      %p60 = por %p58, %p59
      %p62 = scmp.ne.s32.totalorder %s45, %s61
      %p63 = scmp.eq.s32.totalorder %s25, 0
      %p64 = por %p62, %p63
      %s65 = ssub.s32 %s26, %s38
      %p66 = scmp.eq.s32.totalorder %s65, 0
      %s68 = sadd.s32 %s67, 1
      %s69 = scalar_select %p66, %s67, %s68
      %p72 = pneg %p66
      %p73 = scmp.eq.s32.totalorder %s19, 5
      %p74 = por %p72, %p73
      %p75 = scmp.ne.s32.totalorder %s67, %s70
      %p76 = scmp.eq.s32.totalorder %s19, 0
      %p77 = por %p75, %p76
      %p78 = scmp.ne.s32.totalorder %s67, %s70
      %p79 = scmp.eq.s32.totalorder %s24, 5
      %p80 = por %p78, %p79
      %p81 = scmp.ne.s32.totalorder %s70, %s71
      %p82 = scmp.eq.s32.totalorder %s24, 0
      %p83 = por %p81, %p82
      %p84 = scmp.ne.s32.totalorder %s70, %s71
      %p85 = scmp.eq.s32.totalorder %s25, 5
      %p86 = por %p84, %p85
      %p88 = scmp.ne.s32.totalorder %s71, %s87
      %p89 = scmp.eq.s32.totalorder %s25, 0
      %p90 = por %p88, %p89
      %s91 = ssub.s32 %s26, %s38
      %p92 = scmp.eq.s32.totalorder %s91, 0
      %s94 = sadd.s32 %s93, 1
      %s95 = scalar_select %p92, %s93, %s94
      %p98 = pneg %p92
      %p99 = scmp.eq.s32.totalorder %s19, 5
      %p100 = por %p98, %p99
      %p101 = scmp.ne.s32.totalorder %s93, %s96
      %p102 = scmp.eq.s32.totalorder %s19, 0
      %p103 = por %p101, %p102
      %p104 = scmp.ne.s32.totalorder %s93, %s96
      %p105 = scmp.eq.s32.totalorder %s24, 5
      %p106 = por %p104, %p105
      %p107 = scmp.ne.s32.totalorder %s96, %s97
      %p108 = scmp.eq.s32.totalorder %s24, 0
      %p109 = por %p107, %p108
      %p110 = scmp.ne.s32.totalorder %s96, %s97
      %p111 = scmp.eq.s32.totalorder %s25, 5
      %p112 = por %p110, %p111
      %p114 = scmp.ne.s32.totalorder %s97, %s113
      %p115 = scmp.eq.s32.totalorder %s25, 0
      %p116 = por %p114, %p115
      %s118 = sadd.s32 %s117, 1
      %p121 = scmp.eq.s32.totalorder %s19, 5
      %p122 = scmp.ne.s32.totalorder %s117, %s119
      %p123 = scmp.eq.s32.totalorder %s19, 0
      %p124 = por %p122, %p123
      %p125 = scmp.ne.s32.totalorder %s117, %s119
      %p126 = scmp.eq.s32.totalorder %s24, 5
      %p127 = por %p125, %p126
      %p128 = scmp.ne.s32.totalorder %s119, %s120
      %p129 = scmp.eq.s32.totalorder %s24, 0
      %p130 = por %p128, %p129
      %p131 = scmp.ne.s32.totalorder %s119, %s120
      %p132 = scmp.eq.s32.totalorder %s25, 5
      %p133 = por %p131, %p132
      %p135 = scmp.ne.s32.totalorder %s120, %s134
      %p136 = scmp.eq.s32.totalorder %s25, 0
      %p137 = por %p135, %p136
      %s139 = sadd.s32 %s138, 1
      %p142 = scmp.eq.s32.totalorder %s19, 5
      %p143 = scmp.ne.s32.totalorder %s138, %s140
      %p144 = scmp.eq.s32.totalorder %s19, 0
      %p145 = por %p143, %p144
      %p146 = scmp.ne.s32.totalorder %s138, %s140
      %p147 = scmp.eq.s32.totalorder %s24, 5
      %p148 = por %p146, %p147
      %p149 = scmp.ne.s32.totalorder %s140, %s141
      %p150 = scmp.eq.s32.totalorder %s24, 0
      %p151 = por %p149, %p150
      %p152 = scmp.ne.s32.totalorder %s140, %s141
      %p153 = scmp.eq.s32.totalorder %s25, 5
      %p154 = por %p152, %p153
      %p156 = scmp.ne.s32.totalorder %s141, %s155
      %p157 = scmp.eq.s32.totalorder %s25, 0
      %p158 = por %p156, %p157
      %p159 = scmp.le.s32.totalorder 1, %s19
      %p160 = scmp.lt.s32.totalorder %s19, 7
      %p161 = pnand %p159, %p160
      %p162 = pneg %p161
      // Predicated region
      $region9: #{tpu_custom_call.1} parent=5 // pred_check
        _
      $region10: #{tpu_custom_call.1} parent=5 // pred_check_branch
        %164 = sbr.rel (%p161) target = $region12
      $region11: #{tpu_custom_call.1} parent=5 // pred_region
        %s165 = ssub.s32 %s19, 1
        // Predicated region
        $region13: #{tpu_custom_call.1} parent=11 // pred_check
          %p166 = pneg %p130
        $region14: #{tpu_custom_call.1} parent=11 // pred_check_branch
          %168 = sbr.rel (%p166) target = $region16
        $region15: #{tpu_custom_call.1} parent=11 // pred_region
          _
        $region16: #{tpu_custom_call.1} parent=11 // pred_fallthru
          _
      $region12: #{tpu_custom_call.1} parent=5 // pred_fallthru
        _
      %p169 = scmp.lt.s32.totalorder %s19, 6
      // Predicated region
      $region17: #{tpu_custom_call.1} parent=5 // pred_check
        %p170 = pneg %p169
      $region18: #{tpu_custom_call.1} parent=5 // pred_check_branch
        %172 = sbr.rel (%p170) target = $region20
      $region19: #{tpu_custom_call.1} parent=5 // pred_region
        // Predicated region
        $region21: #{tpu_custom_call.1} parent=19 // pred_check
          %p173 = pneg %p51
        $region22: #{tpu_custom_call.1} parent=19 // pred_check_branch
          %175 = sbr.rel (%p173) target = $region24
        $region23: #{tpu_custom_call.1} parent=19 // pred_region
          %s176 = sand.u32 %s41, 1
          %s177 = scalar_lea.sflag [#allocation7], %s176
          %s178 = sand.u32 %s41, 1
          %s179 = smul.addr %s178, 64
          %s180 = scalar_lea.vmem [#allocation6], %s179
          %s182 = ssub.s32 1024, 1024
          %183 = vsyncadd %s177, %s182
          %s184 = smul.addr %s26, 16
          %s185 = smul.addr %s184, 64
          %s186 = scalar_lea.hbm %s2, %s185
          %s187 = sshll.u32 %s180, 4
          %s188 = int_to_ptr.vmem [resolvable:$true] %s187
          %193 = dma.hbm_to_vmem [thread:$0]  %s186, 1024, %s188, %s177, 64, 64, 4
        $region24: #{tpu_custom_call.1} parent=19 // pred_fallthru
          _
        // Predicated region
        $region25: #{tpu_custom_call.1} parent=19 // pred_check
          %p194 = pneg %p77
        $region26: #{tpu_custom_call.1} parent=19 // pred_check_branch
          %196 = sbr.rel (%p194) target = $region28
        $region27: #{tpu_custom_call.1} parent=19 // pred_region
          %s197 = sand.u32 %s19, 1
          %s198 = scalar_lea.sflag [#allocation10], %s197
          %s199 = sand.u32 %s67, 1
          %s200 = scalar_lea.vmem [#allocation9], %s199
          %s202 = ssub.s32 16, 16
          %203 = vsyncadd %s198, %s202
          %s204 = smul.addr %s26, 16
          %s205 = scalar_lea.hbm %s3, %s204
          %s207 = sshll.u32 %s200, 4
          %s208 = int_to_ptr.vmem [resolvable:$true] %s207
          %210 = dma.hbm_to_vmem [thread:$0]  %s205, 16, %s208, %s198
        $region28: #{tpu_custom_call.1} parent=19 // pred_fallthru
          _
        // Predicated region
        $region29: #{tpu_custom_call.1} parent=19 // pred_check
          %p211 = pneg %p103
        $region30: #{tpu_custom_call.1} parent=19 // pred_check_branch
          %213 = sbr.rel (%p211) target = $region32
        $region31: #{tpu_custom_call.1} parent=19 // pred_region
          %s214 = sand.u32 %s19, 1
          %s215 = scalar_lea.sflag [#allocation10], %s214
          %s216 = sand.u32 %s93, 1
          %s217 = scalar_lea.vmem [#allocation11], %s216
          %s219 = ssub.s32 16, 16
          %220 = vsyncadd %s215, %s219
          %s221 = smul.addr %s26, 16
          %s222 = scalar_lea.hbm %s4, %s221
          %s224 = sshll.u32 %s217, 4
          %s225 = int_to_ptr.vmem [resolvable:$true] %s224
          %227 = dma.hbm_to_vmem [thread:$0]  %s222, 16, %s225, %s215
        $region32: #{tpu_custom_call.1} parent=19 // pred_fallthru
          _
      $region20: #{tpu_custom_call.1} parent=5 // pred_fallthru
        _
      %p228 = scmp.le.s32.totalorder 1, %s19
      %p229 = scmp.lt.s32.totalorder %s19, 7
      %p230 = pnand %p228, %p229
      %p231 = pneg %p230
      // Predicated region
      $region33: #{tpu_custom_call.1} parent=5 // pred_check
        _
      $region34: #{tpu_custom_call.1} parent=5 // pred_check_branch
        %233 = sbr.rel (%p230) target = $region36
      $region35: #{tpu_custom_call.1} parent=5 // pred_region
        %s234 = ssub.s32 %s19, 1
        %s235 = sand.u32 %s44, 1
        %s236 = scalar_lea.sflag [#allocation7], %s235
        %s237 = sand.u32 %s44, 1
        %s238 = smul.addr %s237, 64
        %s239 = scalar_lea.vmem [#allocation6], %s238
        // Predicated region
        $region37: #{tpu_custom_call.1} parent=35 // pred_check
          %p240 = pneg %p57
        $region38: #{tpu_custom_call.1} parent=35 // pred_check_branch
          %242 = sbr.rel (%p240) target = $region40
        $region39: #{tpu_custom_call.1} parent=35 // pred_region
          %243 = dma.done %s236, 1024
        $region40: #{tpu_custom_call.1} parent=35 // pred_fallthru
          _
        %s244 = sand.u32 %s24, 1
        %s245 = scalar_lea.sflag [#allocation10], %s244
        %s246 = sand.u32 %s70, 1
        %s247 = scalar_lea.vmem [#allocation9], %s246
        // Predicated region
        $region41: #{tpu_custom_call.1} parent=35 // pred_check
          %p248 = pneg %p83
        $region42: #{tpu_custom_call.1} parent=35 // pred_check_branch
          %250 = sbr.rel (%p248) target = $region44
        $region43: #{tpu_custom_call.1} parent=35 // pred_region
          %251 = dma.done %s245, 16
        $region44: #{tpu_custom_call.1} parent=35 // pred_fallthru
          _
        %s252 = sand.u32 %s24, 1
        %s253 = scalar_lea.sflag [#allocation10], %s252
        %s254 = sand.u32 %s96, 1
        %s255 = scalar_lea.vmem [#allocation11], %s254
        // Predicated region
        $region45: #{tpu_custom_call.1} parent=35 // pred_check
          %p256 = pneg %p109
        $region46: #{tpu_custom_call.1} parent=35 // pred_check_branch
          %258 = sbr.rel (%p256) target = $region48
        $region47: #{tpu_custom_call.1} parent=35 // pred_region
          %259 = dma.done %s253, 16
        $region48: #{tpu_custom_call.1} parent=35 // pred_fallthru
          _
        %s260 = sand.u32 %s44, 1
        %s261 = scalar_lea.sflag [#allocation7], %s260
        %s262 = sand.u32 %s44, 1
        %s263 = smul.addr %s262, 64
        %s264 = scalar_lea.vmem [#allocation6], %s263
        %p265 = pneg %p57
        %p266 = pneg %p54
        %s267 = sand.u32 %s24, 1
        %s268 = scalar_lea.sflag [#allocation10], %s267
        %s269 = sand.u32 %s70, 1
        %s270 = scalar_lea.vmem [#allocation9], %s269
        %p271 = pneg %p83
        %p272 = pneg %p80
        %s273 = sand.u32 %s24, 1
        %s274 = scalar_lea.sflag [#allocation10], %s273
        %s275 = sand.u32 %s96, 1
        %s276 = scalar_lea.vmem [#allocation11], %s275
        %p277 = pneg %p109
        %p278 = pneg %p106
        %p279 = pneg %p130
        %p280 = pneg %p127
        %p281 = pneg %p151
        %p282 = pneg %p148
        %p284 = scmp.eq.s32.totalorder %s28, 0
        %p285 = scmp.eq.s32.totalorder %s29, 0
        %p286 = pnand %p284, %p285
        %p287 = pneg %p286
        // Predicated region
        $region49: #{tpu_custom_call.1} parent=35 // pred_check
          _
        $region50: #{tpu_custom_call.1} parent=35 // pred_check_branch
          %289 = sbr.rel (%p286) target = $region52
        $region51: #{tpu_custom_call.1} parent=35 // pred_region
          #allocation14 [shape = 'u32[9]{0}', space=smem, size = 0x24, scoped, tag = 'DMA stride descriptor']
          %s291 = sshll.u32 1, 14
          %s292 = sxor.u32 4294967295, %s291
          %s294 = sld [smem:[#allocation0]]
          %s295 = sadd.s32 2, %s294
          %s297 = sshll.u32 7, 26
          %s298 = sxor.u32 4294967295, %s297
          %s299 = sand.u32 0, %s298
          %s300 = sshll.u32 %s295, 26
          %s301 = sor.u32 %s299, %s300
          %s302 = sshll.u32 [#allocation2], 4
          %s303 = int_to_ptr.vmem [resolvable:$true] %s302
          %306 = sst [smem:[#allocation14]] 512
          %s307 = scalar_lea.smem [#allocation14], 1
          %308 = sst [smem:[%s307]] 512
          %s309 = scalar_lea.smem [#allocation14], 2
          %310 = sst [smem:[%s309]] 4
          %s311 = scalar_lea.smem [#allocation14], 3
          %312 = sst [smem:[%s311]] 64
          %s313 = scalar_lea.smem [#allocation14], 4
          %314 = sst [smem:[%s313]] 128
          %s315 = scalar_lea.smem [#allocation14], 5
          %316 = sst [smem:[%s315]] 2
          %s317 = scalar_lea.smem [#allocation14], 6
          %318 = sst [smem:[%s317]] 256
          %s319 = scalar_lea.smem [#allocation14], 7
          %320 = sst [smem:[%s319]] 64
          %s321 = scalar_lea.smem [#allocation14], 8
          %322 = sst [smem:[%s321]] 4
          %324 = dma.general %s0, 16384, %s303, [#allocation5], [#allocation13], [#allocation14], %s301, 0
          %s325 = scalar_lea.sflag [#allocation5], 1
          // Predicated region
          $region53: #{tpu_custom_call.1} parent=51 // pred_check
            _
          $region54: #{tpu_custom_call.1} parent=51 // pred_check_branch
            %327 = sbr.rel target = $region56
          $region55: #{tpu_custom_call.1} parent=51 // pred_region
            %328 = sst [smem:[#allocation17]] [#allocation16]
            %329 = sst [smem:[#allocation18]] [#allocation15]
          $region56: #{tpu_custom_call.1} parent=51 // pred_fallthru
            _
          %331 = shalt.err (0)
          %s333 = sshll.u32 [#allocation4], 4
          %s334 = int_to_ptr.vmem [resolvable:$true] %s333
          %336 = dma.hbm_to_vmem [thread:$0]  %s1, 4096, %s334, %s325
          %s337 = smul.u32 4, 64
          %s338 = smul.u32 %s337, 4
          %s339 = sshll.u32 %s338, 4
          %340 = dma.done [#allocation5], %s339
          %s341 = smul.u32 %s337, 1
          %s342 = sshll.u32 %s341, 4
          %343 = dma.done %s325, %s342
        $region52: #{tpu_custom_call.1} parent=35 // pred_fallthru
          _
        %p344 = scmp.gt.s32.totalorder %s28, 0
        %p345 = pnand %p344, %p285
        %p346 = pneg %p345
        // Predicated region
        $region57: #{tpu_custom_call.1} parent=35 // pred_check
          _
        $region58: #{tpu_custom_call.1} parent=35 // pred_check_branch
          %348 = sbr.rel (%p345) target = $region60
        $region59: #{tpu_custom_call.1} parent=35 // pred_region
          %v349 = vld [vmem:[#allocation3] sm:$0xff]
          %v350 = vld [vmem:[#allocation3 + $0x8] sm:$0xff]
          %v351 = vld [vmem:[#allocation3 + $0x10] sm:$0xff]
          %v352 = vld [vmem:[#allocation3 + $0x18] sm:$0xff]
          %v353 = vld [vmem:[#allocation3 + $0x20] sm:$0xff]
          %v354 = vld [vmem:[#allocation3 + $0x28] sm:$0xff]
          %v355 = vld [vmem:[#allocation3 + $0x30] sm:$0xff]
          %v356 = vld [vmem:[#allocation3 + $0x38] sm:$0xff]
          %v357 = vld [vmem:[#allocation3 + $0x40] sm:$0xff]
          %v358 = vld [vmem:[#allocation3 + $0x48] sm:$0xff]
          %v359 = vld [vmem:[#allocation3 + $0x50] sm:$0xff]
          %v360 = vld [vmem:[#allocation3 + $0x58] sm:$0xff]
          %v361 = vld [vmem:[#allocation3 + $0x60] sm:$0xff]
          %v362 = vld [vmem:[#allocation3 + $0x68] sm:$0xff]
          %v363 = vld [vmem:[#allocation3 + $0x70] sm:$0xff]
          %v364 = vld [vmem:[#allocation3 + $0x78] sm:$0xff]
          %v365 = vld [vmem:[%s239] sm:$0xf]
          %v366 = vld [vmem:[%s239 + $0x4] sm:$0xf]
          %v367 = vld [vmem:[%s239 + $0x8] sm:$0xf]
          %v368 = vld [vmem:[%s239 + $0xc] sm:$0xf]
          %v369 = vld [vmem:[%s239 + $0x10] sm:$0xf]
          %v370 = vld [vmem:[%s239 + $0x14] sm:$0xf]
          %v371 = vld [vmem:[%s239 + $0x18] sm:$0xf]
          %v372 = vld [vmem:[%s239 + $0x1c] sm:$0xf]
          %v373 = vld [vmem:[%s239 + $0x20] sm:$0xf]
          %v374 = vld [vmem:[%s239 + $0x24] sm:$0xf]
          %v375 = vld [vmem:[%s239 + $0x28] sm:$0xf]
          %v376 = vld [vmem:[%s239 + $0x2c] sm:$0xf]
          %v377 = vld [vmem:[%s239 + $0x30] sm:$0xf]
          %v378 = vld [vmem:[%s239 + $0x34] sm:$0xf]
          %v379 = vld [vmem:[%s239 + $0x38] sm:$0xf]
          %v380 = vld [vmem:[%s239 + $0x3c] sm:$0xf]
          %v397 = vunpack.c.l.b16 %v365
          %v398 = vunpack.c.l.b16 %v366
          %v399 = vunpack.c.l.b16 %v367
          %v400 = vunpack.c.l.b16 %v368
          %v401 = vunpack.c.l.b16 %v369
          %v402 = vunpack.c.l.b16 %v370
          %v403 = vunpack.c.l.b16 %v371
          %v404 = vunpack.c.l.b16 %v372
          %v405 = vunpack.c.l.b16 %v373
          %v406 = vunpack.c.l.b16 %v374
          %v407 = vunpack.c.l.b16 %v375
          %v408 = vunpack.c.l.b16 %v376
          %v409 = vunpack.c.l.b16 %v377
          %v410 = vunpack.c.l.b16 %v378
          %v411 = vunpack.c.l.b16 %v379
          %v412 = vunpack.c.l.b16 %v380
          %v413 = vpack.c.b16 %v398, %v397
          %v414 = vpack.c.b16 %v400, %v399
          %v415 = vpack.c.b16 %v402, %v401
          %v416 = vpack.c.b16 %v404, %v403
          %v417 = vpack.c.b16 %v406, %v405
          %v418 = vpack.c.b16 %v408, %v407
          %v419 = vpack.c.b16 %v410, %v409
          %v420 = vpack.c.b16 %v412, %v411
          %429 = vmatprep.subr.bf16.mxu0 0
          %430 = vmatpush1.bf16.msra.mxu0 %v413
          %431 = vmatprep.subr.bf16.mxu0 0
          %432 = vmatpush1.bf16.msra.mxu0 %v414
          %433 = vmatprep.subr.bf16.mxu0 0
          %434 = vmatpush1.bf16.msra.mxu0 %v415
          %435 = vmatprep.subr.bf16.mxu0 0
          %436 = vmatpush1.bf16.msra.mxu0 %v416
          %437 = vmatprep.subr.bf16.mxu0 0
          %438 = vmatpush1.bf16.msra.mxu0 %v417
          %439 = vmatprep.subr.bf16.mxu0 0
          %440 = vmatpush1.bf16.msra.mxu0 %v418
          %441 = vmatprep.subr.bf16.mxu0 0
          %442 = vmatpush1.bf16.msra.mxu0 %v419
          %443 = vmatprep.subr.bf16.mxu0 0
          %444 = vmatpush1.bf16.msra.mxu0 %v420
          %445 = vmatprep.subr.bf16.mxu0 0
          %446 = vmatpush1.bf16.msra.mxu0 0
          %447 = vmatprep.subr.bf16.mxu0 0
          %448 = vmatpush1.bf16.msra.mxu0 0
          %449 = vmatprep.subr.bf16.mxu0 0
          %450 = vmatpush1.bf16.msra.mxu0 0
          %451 = vmatprep.subr.bf16.mxu0 0
          %452 = vmatpush1.bf16.msra.mxu0 0
          %453 = vmatprep.subr.bf16.mxu0 0
          %454 = vmatpush1.bf16.msra.mxu0 0
          %455 = vmatprep.subr.bf16.mxu0 0
          %456 = vmatpush1.bf16.msra.mxu0 0
          %457 = vmatprep.subr.bf16.mxu0 0
          %458 = vmatpush1.bf16.msra.mxu0 0
          %459 = vmatprep.subr.bf16.mxu0 0
          %460 = vmatpush1.bf16.msra.mxu0 0
          %461 = vmatprep.mubr.bf16.mxu0 0
          %462 = vmatmul.mubr.bf16.gmra.mrb[0].mxu0 %v349
          %v463 = vpop.f32.mrb[0].mxu0
          %v464 = vadd.f32 0.0, %v463
          %v465 = vpop.f32.mrb[0].mxu0
          %v466 = vpop.f32.mrb[0].mxu0
          %v467 = vadd.f32 0.0, %v466
          %v468 = vpop.f32.mrb[0].mxu0
          %469 = vmatprep.mubr.bf16.mxu0 0
          %470 = vmatmul.mubr.bf16.gmra.mrb[0].mxu0 %v350
          %v471 = vpop.f32.mrb[0].mxu0
          %v472 = vadd.f32 0.0, %v471
          %v473 = vpop.f32.mrb[0].mxu0
          %v474 = vpop.f32.mrb[0].mxu0
          %v475 = vadd.f32 0.0, %v474
          %v476 = vpop.f32.mrb[0].mxu0
          %477 = vmatprep.mubr.bf16.mxu0 0
          %478 = vmatmul.mubr.bf16.gmra.mrb[0].mxu0 %v351
          %v479 = vpop.f32.mrb[0].mxu0
          %v480 = vadd.f32 0.0, %v479
          %v481 = vpop.f32.mrb[0].mxu0
          %v482 = vpop.f32.mrb[0].mxu0
          %v483 = vadd.f32 0.0, %v482
          %v484 = vpop.f32.mrb[0].mxu0
          %485 = vmatprep.mubr.bf16.mxu0 0
          %486 = vmatmul.mubr.bf16.gmra.mrb[0].mxu0 %v352
          %v487 = vpop.f32.mrb[0].mxu0
          %v488 = vadd.f32 0.0, %v487
          %v489 = vpop.f32.mrb[0].mxu0
          %v490 = vpop.f32.mrb[0].mxu0
          %v491 = vadd.f32 0.0, %v490
          %v492 = vpop.f32.mrb[0].mxu0
          %493 = vmatprep.mubr.bf16.mxu0 0
          %494 = vmatmul.mubr.bf16.gmra.mrb[0].mxu0 %v353
          %v495 = vpop.f32.mrb[0].mxu0
          %v496 = vadd.f32 0.0, %v495
          %v497 = vpop.f32.mrb[0].mxu0
          %v498 = vpop.f32.mrb[0].mxu0
          %v499 = vadd.f32 0.0, %v498
          %v500 = vpop.f32.mrb[0].mxu0
          %501 = vmatprep.mubr.bf16.mxu0 0
          %502 = vmatmul.mubr.bf16.gmra.mrb[0].mxu0 %v354
          %v503 = vpop.f32.mrb[0].mxu0
          %v504 = vadd.f32 0.0, %v503
          %v505 = vpop.f32.mrb[0].mxu0
          %v506 = vpop.f32.mrb[0].mxu0
          %v507 = vadd.f32 0.0, %v506
          %v508 = vpop.f32.mrb[0].mxu0
          %509 = vmatprep.mubr.bf16.mxu0 0
          %510 = vmatmul.mubr.bf16.gmra.mrb[0].mxu0 %v355
          %v511 = vpop.f32.mrb[0].mxu0
          %v512 = vadd.f32 0.0, %v511
          %v513 = vpop.f32.mrb[0].mxu0
          %v514 = vpop.f32.mrb[0].mxu0
          %v515 = vadd.f32 0.0, %v514
          %v516 = vpop.f32.mrb[0].mxu0
          %517 = vmatprep.mubr.bf16.mxu0 0
          %518 = vmatmul.mubr.bf16.gmra.mrb[0].mxu0 %v356
          %v519 = vpop.f32.mrb[0].mxu0
          %v520 = vadd.f32 0.0, %v519
          %v521 = vpop.f32.mrb[0].mxu0
          %v522 = vpop.f32.mrb[0].mxu0
          %v523 = vadd.f32 0.0, %v522
          %v524 = vpop.f32.mrb[0].mxu0
          %525 = vmatprep.mubr.bf16.mxu0 0
          %526 = vmatmul.mubr.bf16.gmra.mrb[0].mxu0 %v357
          %v527 = vpop.f32.mrb[0].mxu0
          %v528 = vadd.f32 0.0, %v527
          %v529 = vpop.f32.mrb[0].mxu0
          %v530 = vpop.f32.mrb[0].mxu0
          %v531 = vadd.f32 0.0, %v530
          %v532 = vpop.f32.mrb[0].mxu0
          %533 = vmatprep.mubr.bf16.mxu0 0
          %534 = vmatmul.mubr.bf16.gmra.mrb[0].mxu0 %v358
          %v535 = vpop.f32.mrb[0].mxu0
          %v536 = vadd.f32 0.0, %v535
          %v537 = vpop.f32.mrb[0].mxu0
          %v538 = vpop.f32.mrb[0].mxu0
          %v539 = vadd.f32 0.0, %v538
          %v540 = vpop.f32.mrb[0].mxu0
          %541 = vmatprep.mubr.bf16.mxu0 0
          %542 = vmatmul.mubr.bf16.gmra.mrb[0].mxu0 %v359
          %v543 = vpop.f32.mrb[0].mxu0
          %v544 = vadd.f32 0.0, %v543
          %v545 = vpop.f32.mrb[0].mxu0
          %v546 = vpop.f32.mrb[0].mxu0
          %v547 = vadd.f32 0.0, %v546
          %v548 = vpop.f32.mrb[0].mxu0
          %549 = vmatprep.mubr.bf16.mxu0 0
          %550 = vmatmul.mubr.bf16.gmra.mrb[0].mxu0 %v360
          %v551 = vpop.f32.mrb[0].mxu0
          %v552 = vadd.f32 0.0, %v551
          %v553 = vpop.f32.mrb[0].mxu0
          %v554 = vpop.f32.mrb[0].mxu0
          %v555 = vadd.f32 0.0, %v554
          %v556 = vpop.f32.mrb[0].mxu0
          %557 = vmatprep.mubr.bf16.mxu0 0
          %558 = vmatmul.mubr.bf16.gmra.mrb[0].mxu0 %v361
          %v559 = vpop.f32.mrb[0].mxu0
          %v560 = vadd.f32 0.0, %v559
          %v561 = vpop.f32.mrb[0].mxu0
          %v562 = vpop.f32.mrb[0].mxu0
          %v563 = vadd.f32 0.0, %v562
          %v564 = vpop.f32.mrb[0].mxu0
          %565 = vmatprep.mubr.bf16.mxu0 0
          %566 = vmatmul.mubr.bf16.gmra.mrb[0].mxu0 %v362
          %v567 = vpop.f32.mrb[0].mxu0
          %v568 = vadd.f32 0.0, %v567
          %v569 = vpop.f32.mrb[0].mxu0
          %v570 = vpop.f32.mrb[0].mxu0
          %v571 = vadd.f32 0.0, %v570
          %v572 = vpop.f32.mrb[0].mxu0
          %573 = vmatprep.mubr.bf16.mxu0 0
          %574 = vmatmul.mubr.bf16.gmra.mrb[0].mxu0 %v363
          %v575 = vpop.f32.mrb[0].mxu0
          %v576 = vadd.f32 0.0, %v575
          %v577 = vpop.f32.mrb[0].mxu0
          %v578 = vpop.f32.mrb[0].mxu0
          %v579 = vadd.f32 0.0, %v578
          %v580 = vpop.f32.mrb[0].mxu0
          %581 = vmatprep.mubr.bf16.mxu0 0
          %582 = vmatmul.mubr.bf16.gmra.mrb[0].mxu0 %v364
          %v583 = vpop.f32.mrb[0].mxu0
          %v584 = vadd.f32 0.0, %v583
          %v585 = vpop.f32.mrb[0].mxu0
          %v586 = vpop.f32.mrb[0].mxu0
          %v587 = vadd.f32 0.0, %v586
          %v588 = vpop.f32.mrb[0].mxu0
          %589 = vdwg.mxu0
          %v590 = vpack.c.bf16 %v467, %v464
          %v591 = vpack.c.bf16 %v475, %v472
          %v592 = vpack.c.bf16 %v483, %v480
          %v593 = vpack.c.bf16 %v491, %v488
          %v594 = vpack.c.bf16 %v499, %v496
          %v595 = vpack.c.bf16 %v507, %v504
          %v596 = vpack.c.bf16 %v515, %v512
          %v597 = vpack.c.bf16 %v523, %v520
          %v598 = vpack.c.bf16 %v531, %v528
          %v599 = vpack.c.bf16 %v539, %v536
          %v600 = vpack.c.bf16 %v547, %v544
          %v601 = vpack.c.bf16 %v555, %v552
          %v602 = vpack.c.bf16 %v563, %v560
          %v603 = vpack.c.bf16 %v571, %v568
          %v604 = vpack.c.bf16 %v579, %v576
          %v605 = vpack.c.bf16 %v587, %v584
          %606 = vst [vmem:[#allocation4] sm:$0xff] %v590
          %607 = vst [vmem:[#allocation4 + $0x8] sm:$0xff] %v591
          %608 = vst [vmem:[#allocation4 + $0x10] sm:$0xff] %v592
          %609 = vst [vmem:[#allocation4 + $0x18] sm:$0xff] %v593
          %610 = vst [vmem:[#allocation4 + $0x20] sm:$0xff] %v594
          %611 = vst [vmem:[#allocation4 + $0x28] sm:$0xff] %v595
          %612 = vst [vmem:[#allocation4 + $0x30] sm:$0xff] %v596
          %613 = vst [vmem:[#allocation4 + $0x38] sm:$0xff] %v597
          %614 = vst [vmem:[#allocation4 + $0x40] sm:$0xff] %v598
          %615 = vst [vmem:[#allocation4 + $0x48] sm:$0xff] %v599
          %616 = vst [vmem:[#allocation4 + $0x50] sm:$0xff] %v600
          %617 = vst [vmem:[#allocation4 + $0x58] sm:$0xff] %v601
          %618 = vst [vmem:[#allocation4 + $0x60] sm:$0xff] %v602
          %619 = vst [vmem:[#allocation4 + $0x68] sm:$0xff] %v603
          %620 = vst [vmem:[#allocation4 + $0x70] sm:$0xff] %v604
          %621 = vst [vmem:[#allocation4 + $0x78] sm:$0xff] %v605
          %s622 = scalar_lea.vmem [#allocation3], 128
          %v623 = vld [vmem:[%s622] sm:$0xff]
          %v624 = vld [vmem:[%s622 + $0x8] sm:$0xff]
          %v625 = vld [vmem:[%s622 + $0x10] sm:$0xff]
          %v626 = vld [vmem:[%s622 + $0x18] sm:$0xff]
          %v627 = vld [vmem:[%s622 + $0x20] sm:$0xff]
          %v628 = vld [vmem:[%s622 + $0x28] sm:$0xff]
          %v629 = vld [vmem:[%s622 + $0x30] sm:$0xff]
          %v630 = vld [vmem:[%s622 + $0x38] sm:$0xff]
          %v631 = vld [vmem:[%s622 + $0x40] sm:$0xff]
          %v632 = vld [vmem:[%s622 + $0x48] sm:$0xff]
          %v633 = vld [vmem:[%s622 + $0x50] sm:$0xff]
          %v634 = vld [vmem:[%s622 + $0x58] sm:$0xff]
          %v635 = vld [vmem:[%s622 + $0x60] sm:$0xff]
          %v636 = vld [vmem:[%s622 + $0x68] sm:$0xff]
          %v637 = vld [vmem:[%s622 + $0x70] sm:$0xff]
          %v638 = vld [vmem:[%s622 + $0x78] sm:$0xff]
          %v639 = vld [vmem:[%s239] sm:$0xf]
          %v640 = vld [vmem:[%s239 + $0x4] sm:$0xf]
          %v641 = vld [vmem:[%s239 + $0x8] sm:$0xf]
          %v642 = vld [vmem:[%s239 + $0xc] sm:$0xf]
          %v643 = vld [vmem:[%s239 + $0x10] sm:$0xf]
          %v644 = vld [vmem:[%s239 + $0x14] sm:$0xf]
          %v645 = vld [vmem:[%s239 + $0x18] sm:$0xf]
          %v646 = vld [vmem:[%s239 + $0x1c] sm:$0xf]
          %v647 = vld [vmem:[%s239 + $0x20] sm:$0xf]
          %v648 = vld [vmem:[%s239 + $0x24] sm:$0xf]
          %v649 = vld [vmem:[%s239 + $0x28] sm:$0xf]
          %v650 = vld [vmem:[%s239 + $0x2c] sm:$0xf]
          %v651 = vld [vmem:[%s239 + $0x30] sm:$0xf]
          %v652 = vld [vmem:[%s239 + $0x34] sm:$0xf]
          %v653 = vld [vmem:[%s239 + $0x38] sm:$0xf]
          %v654 = vld [vmem:[%s239 + $0x3c] sm:$0xf]
          %v671 = vunpack.c.l.b16 %v639
          %v672 = vunpack.c.l.b16 %v640
          %v673 = vunpack.c.l.b16 %v641
          %v674 = vunpack.c.l.b16 %v642
          %v675 = vunpack.c.l.b16 %v643
          %v676 = vunpack.c.l.b16 %v644
          %v677 = vunpack.c.l.b16 %v645
          %v678 = vunpack.c.l.b16 %v646
          %v679 = vunpack.c.l.b16 %v647
          %v680 = vunpack.c.l.b16 %v648
          %v681 = vunpack.c.l.b16 %v649
          %v682 = vunpack.c.l.b16 %v650
          %v683 = vunpack.c.l.b16 %v651
          %v684 = vunpack.c.l.b16 %v652
          %v685 = vunpack.c.l.b16 %v653
          %v686 = vunpack.c.l.b16 %v654
          %v687 = vpack.c.b16 %v672, %v671
          %v688 = vpack.c.b16 %v674, %v673
          %v689 = vpack.c.b16 %v676, %v675
          %v690 = vpack.c.b16 %v678, %v677
          %v691 = vpack.c.b16 %v680, %v679
          %v692 = vpack.c.b16 %v682, %v681
          %v693 = vpack.c.b16 %v684, %v683
          %v694 = vpack.c.b16 %v686, %v685
          %703 = vmatprep.subr.bf16.mxu0 0
          %704 = vmatpush1.bf16.msra.mxu0 %v687
          %705 = vmatprep.subr.bf16.mxu0 0
          %706 = vmatpush1.bf16.msra.mxu0 %v688
          %707 = vmatprep.subr.bf16.mxu0 0
          %708 = vmatpush1.bf16.msra.mxu0 %v689
          %709 = vmatprep.subr.bf16.mxu0 0
          %710 = vmatpush1.bf16.msra.mxu0 %v690
          %711 = vmatprep.subr.bf16.mxu0 0
          %712 = vmatpush1.bf16.msra.mxu0 %v691
          %713 = vmatprep.subr.bf16.mxu0 0
          %714 = vmatpush1.bf16.msra.mxu0 %v692
          %715 = vmatprep.subr.bf16.mxu0 0
          %716 = vmatpush1.bf16.msra.mxu0 %v693
          %717 = vmatprep.subr.bf16.mxu0 0
          %718 = vmatpush1.bf16.msra.mxu0 %v694
          %719 = vmatprep.subr.bf16.mxu0 0
          %720 = vmatpush1.bf16.msra.mxu0 0
          %721 = vmatprep.subr.bf16.mxu0 0
          %722 = vmatpush1.bf16.msra.mxu0 0
          %723 = vmatprep.subr.bf16.mxu0 0
          %724 = vmatpush1.bf16.msra.mxu0 0
          %725 = vmatprep.subr.bf16.mxu0 0
          %726 = vmatpush1.bf16.msra.mxu0 0
          %727 = vmatprep.subr.bf16.mxu0 0
          %728 = vmatpush1.bf16.msra.mxu0 0
          %729 = vmatprep.subr.bf16.mxu0 0
          %730 = vmatpush1.bf16.msra.mxu0 0
          %731 = vmatprep.subr.bf16.mxu0 0
          %732 = vmatpush1.bf16.msra.mxu0 0
          %733 = vmatprep.subr.bf16.mxu0 0
          %734 = vmatpush1.bf16.msra.mxu0 0
          %735 = vmatprep.mubr.bf16.mxu0 0
          %736 = vmatmul.mubr.bf16.gmra.mrb[0].mxu0 %v623
          %v737 = vpop.f32.mrb[0].mxu0
          %v738 = vadd.f32 0.0, %v737
          %v739 = vpop.f32.mrb[0].mxu0
          %v740 = vpop.f32.mrb[0].mxu0
          %v741 = vadd.f32 0.0, %v740
          %v742 = vpop.f32.mrb[0].mxu0
          %743 = vmatprep.mubr.bf16.mxu0 0
          %744 = vmatmul.mubr.bf16.gmra.mrb[0].mxu0 %v624
          %v745 = vpop.f32.mrb[0].mxu0
          %v746 = vadd.f32 0.0, %v745
          %v747 = vpop.f32.mrb[0].mxu0
          %v748 = vpop.f32.mrb[0].mxu0
          %v749 = vadd.f32 0.0, %v748
          %v750 = vpop.f32.mrb[0].mxu0
          %751 = vmatprep.mubr.bf16.mxu0 0
          %752 = vmatmul.mubr.bf16.gmra.mrb[0].mxu0 %v625
          %v753 = vpop.f32.mrb[0].mxu0
          %v754 = vadd.f32 0.0, %v753
          %v755 = vpop.f32.mrb[0].mxu0
          %v756 = vpop.f32.mrb[0].mxu0
          %v757 = vadd.f32 0.0, %v756
          %v758 = vpop.f32.mrb[0].mxu0
          %759 = vmatprep.mubr.bf16.mxu0 0
          %760 = vmatmul.mubr.bf16.gmra.mrb[0].mxu0 %v626
          %v761 = vpop.f32.mrb[0].mxu0
          %v762 = vadd.f32 0.0, %v761
          %v763 = vpop.f32.mrb[0].mxu0
          %v764 = vpop.f32.mrb[0].mxu0
          %v765 = vadd.f32 0.0, %v764
          %v766 = vpop.f32.mrb[0].mxu0
          %767 = vmatprep.mubr.bf16.mxu0 0
          %768 = vmatmul.mubr.bf16.gmra.mrb[0].mxu0 %v627
          %v769 = vpop.f32.mrb[0].mxu0
          %v770 = vadd.f32 0.0, %v769
          %v771 = vpop.f32.mrb[0].mxu0
          %v772 = vpop.f32.mrb[0].mxu0
          %v773 = vadd.f32 0.0, %v772
          %v774 = vpop.f32.mrb[0].mxu0
          %775 = vmatprep.mubr.bf16.mxu0 0
          %776 = vmatmul.mubr.bf16.gmra.mrb[0].mxu0 %v628
          %v777 = vpop.f32.mrb[0].mxu0
          %v778 = vadd.f32 0.0, %v777
          %v779 = vpop.f32.mrb[0].mxu0
          %v780 = vpop.f32.mrb[0].mxu0
          %v781 = vadd.f32 0.0, %v780
          %v782 = vpop.f32.mrb[0].mxu0
          %783 = vmatprep.mubr.bf16.mxu0 0
          %784 = vmatmul.mubr.bf16.gmra.mrb[0].mxu0 %v629
          %v785 = vpop.f32.mrb[0].mxu0
          %v786 = vadd.f32 0.0, %v785
          %v787 = vpop.f32.mrb[0].mxu0
          %v788 = vpop.f32.mrb[0].mxu0
          %v789 = vadd.f32 0.0, %v788
          %v790 = vpop.f32.mrb[0].mxu0
          %791 = vmatprep.mubr.bf16.mxu0 0
          %792 = vmatmul.mubr.bf16.gmra.mrb[0].mxu0 %v630
          %v793 = vpop.f32.mrb[0].mxu0
          %v794 = vadd.f32 0.0, %v793
          %v795 = vpop.f32.mrb[0].mxu0
          %v796 = vpop.f32.mrb[0].mxu0
          %v797 = vadd.f32 0.0, %v796
          %v798 = vpop.f32.mrb[0].mxu0
          %799 = vmatprep.mubr.bf16.mxu0 0
          %800 = vmatmul.mubr.bf16.gmra.mrb[0].mxu0 %v631
          %v801 = vpop.f32.mrb[0].mxu0
          %v802 = vadd.f32 0.0, %v801
          %v803 = vpop.f32.mrb[0].mxu0
          %v804 = vpop.f32.mrb[0].mxu0
          %v805 = vadd.f32 0.0, %v804
          %v806 = vpop.f32.mrb[0].mxu0
          %807 = vmatprep.mubr.bf16.mxu0 0
          %808 = vmatmul.mubr.bf16.gmra.mrb[0].mxu0 %v632
          %v809 = vpop.f32.mrb[0].mxu0
          %v810 = vadd.f32 0.0, %v809
          %v811 = vpop.f32.mrb[0].mxu0
          %v812 = vpop.f32.mrb[0].mxu0
          %v813 = vadd.f32 0.0, %v812
          %v814 = vpop.f32.mrb[0].mxu0
          %815 = vmatprep.mubr.bf16.mxu0 0
          %816 = vmatmul.mubr.bf16.gmra.mrb[0].mxu0 %v633
          %v817 = vpop.f32.mrb[0].mxu0
          %v818 = vadd.f32 0.0, %v817
          %v819 = vpop.f32.mrb[0].mxu0
          %v820 = vpop.f32.mrb[0].mxu0
          %v821 = vadd.f32 0.0, %v820
          %v822 = vpop.f32.mrb[0].mxu0
          %823 = vmatprep.mubr.bf16.mxu0 0
          %824 = vmatmul.mubr.bf16.gmra.mrb[0].mxu0 %v634
          %v825 = vpop.f32.mrb[0].mxu0
          %v826 = vadd.f32 0.0, %v825
          %v827 = vpop.f32.mrb[0].mxu0
          %v828 = vpop.f32.mrb[0].mxu0
          %v829 = vadd.f32 0.0, %v828
          %v830 = vpop.f32.mrb[0].mxu0
          %831 = vmatprep.mubr.bf16.mxu0 0
          %832 = vmatmul.mubr.bf16.gmra.mrb[0].mxu0 %v635
          %v833 = vpop.f32.mrb[0].mxu0
          %v834 = vadd.f32 0.0, %v833
          %v835 = vpop.f32.mrb[0].mxu0
          %v836 = vpop.f32.mrb[0].mxu0
          %v837 = vadd.f32 0.0, %v836
          %v838 = vpop.f32.mrb[0].mxu0
          %839 = vmatprep.mubr.bf16.mxu0 0
          %840 = vmatmul.mubr.bf16.gmra.mrb[0].mxu0 %v636
          %v841 = vpop.f32.mrb[0].mxu0
          %v842 = vadd.f32 0.0, %v841
          %v843 = vpop.f32.mrb[0].mxu0
          %v844 = vpop.f32.mrb[0].mxu0
          %v845 = vadd.f32 0.0, %v844
          %v846 = vpop.f32.mrb[0].mxu0
          %847 = vmatprep.mubr.bf16.mxu0 0
          %848 = vmatmul.mubr.bf16.gmra.mrb[0].mxu0 %v637
          %v849 = vpop.f32.mrb[0].mxu0
          %v850 = vadd.f32 0.0, %v849
          %v851 = vpop.f32.mrb[0].mxu0
          %v852 = vpop.f32.mrb[0].mxu0
          %v853 = vadd.f32 0.0, %v852
          %v854 = vpop.f32.mrb[0].mxu0
          %855 = vmatprep.mubr.bf16.mxu0 0
          %856 = vmatmul.mubr.bf16.gmra.mrb[0].mxu0 %v638
          %v857 = vpop.f32.mrb[0].mxu0
          %v858 = vadd.f32 0.0, %v857
          %v859 = vpop.f32.mrb[0].mxu0
          %v860 = vpop.f32.mrb[0].mxu0
          %v861 = vadd.f32 0.0, %v860
          %v862 = vpop.f32.mrb[0].mxu0
          %863 = vdwg.mxu0
          %v864 = vpack.c.bf16 %v741, %v738
          %v865 = vpack.c.bf16 %v749, %v746
          %v866 = vpack.c.bf16 %v757, %v754
          %v867 = vpack.c.bf16 %v765, %v762
          %v868 = vpack.c.bf16 %v773, %v770
          %v869 = vpack.c.bf16 %v781, %v778
          %v870 = vpack.c.bf16 %v789, %v786
          %v871 = vpack.c.bf16 %v797, %v794
          %v872 = vpack.c.bf16 %v805, %v802
          %v873 = vpack.c.bf16 %v813, %v810
          %v874 = vpack.c.bf16 %v821, %v818
          %v875 = vpack.c.bf16 %v829, %v826
          %v876 = vpack.c.bf16 %v837, %v834
          %v877 = vpack.c.bf16 %v845, %v842
          %v878 = vpack.c.bf16 %v853, %v850
          %v879 = vpack.c.bf16 %v861, %v858
          %s880 = scalar_lea.vmem [#allocation4], 128
          %881 = vst [vmem:[%s880] sm:$0xff] %v864
          %882 = vst [vmem:[%s880 + $0x8] sm:$0xff] %v865
          %883 = vst [vmem:[%s880 + $0x10] sm:$0xff] %v866
          %884 = vst [vmem:[%s880 + $0x18] sm:$0xff] %v867
          %885 = vst [vmem:[%s880 + $0x20] sm:$0xff] %v868
          %886 = vst [vmem:[%s880 + $0x28] sm:$0xff] %v869
          %887 = vst [vmem:[%s880 + $0x30] sm:$0xff] %v870
          %888 = vst [vmem:[%s880 + $0x38] sm:$0xff] %v871
          %889 = vst [vmem:[%s880 + $0x40] sm:$0xff] %v872
          %890 = vst [vmem:[%s880 + $0x48] sm:$0xff] %v873
          %891 = vst [vmem:[%s880 + $0x50] sm:$0xff] %v874
          %892 = vst [vmem:[%s880 + $0x58] sm:$0xff] %v875
          %893 = vst [vmem:[%s880 + $0x60] sm:$0xff] %v876
          %894 = vst [vmem:[%s880 + $0x68] sm:$0xff] %v877
          %895 = vst [vmem:[%s880 + $0x70] sm:$0xff] %v878
          %896 = vst [vmem:[%s880 + $0x78] sm:$0xff] %v879
        $region60: #{tpu_custom_call.1} parent=35 // pred_fallthru
          _
        %s897 = smul.u32 %s29, 256
        %s898 = sshra.s32 %s897, 4
        %s899 = sand.u32 %s897, 15
        %s900 = smul.u32 %s898, 4
        %s901 = smul.addr %s900, 8
        %s902 = scalar_lea.vmem [#allocation2], %s901
        %v903 = vld [vmem:[%s902] sm:$0xff]
        %v904 = vld [vmem:[%s902 + $0x8] sm:$0xff]
        %v905 = vld [vmem:[%s902 + $0x10] sm:$0xff]
        %v906 = vld [vmem:[%s902 + $0x18] sm:$0xff]
        %v907 = vld [vmem:[%s902 + $0x20] sm:$0xff]
        %v908 = vld [vmem:[%s902 + $0x28] sm:$0xff]
        %v909 = vld [vmem:[%s902 + $0x30] sm:$0xff]
        %v910 = vld [vmem:[%s902 + $0x38] sm:$0xff]
        %v911 = vld [vmem:[%s902 + $0x40] sm:$0xff]
        %v912 = vld [vmem:[%s902 + $0x48] sm:$0xff]
        %v913 = vld [vmem:[%s902 + $0x50] sm:$0xff]
        %v914 = vld [vmem:[%s902 + $0x58] sm:$0xff]
        %v915 = vld [vmem:[%s902 + $0x60] sm:$0xff]
        %v916 = vld [vmem:[%s902 + $0x68] sm:$0xff]
        %v917 = vld [vmem:[%s902 + $0x70] sm:$0xff]
        %v918 = vld [vmem:[%s902 + $0x78] sm:$0xff]
        %v919 = vld [vmem:[%s902 + $0x80] sm:$0xff]
        %v920 = vld [vmem:[%s902 + $0x88] sm:$0xff]
        %v921 = vld [vmem:[%s902 + $0x90] sm:$0xff]
        %v922 = vld [vmem:[%s902 + $0x98] sm:$0xff]
        %v923 = vld [vmem:[%s902 + $0xa0] sm:$0xff]
        %v924 = vld [vmem:[%s902 + $0xa8] sm:$0xff]
        %v925 = vld [vmem:[%s902 + $0xb0] sm:$0xff]
        %v926 = vld [vmem:[%s902 + $0xb8] sm:$0xff]
        %v927 = vld [vmem:[%s902 + $0xc0] sm:$0xff]
        %v928 = vld [vmem:[%s902 + $0xc8] sm:$0xff]
        %v929 = vld [vmem:[%s902 + $0xd0] sm:$0xff]
        %v930 = vld [vmem:[%s902 + $0xd8] sm:$0xff]
        %v931 = vld [vmem:[%s902 + $0xe0] sm:$0xff]
        %v932 = vld [vmem:[%s902 + $0xe8] sm:$0xff]
        %v933 = vld [vmem:[%s902 + $0xf0] sm:$0xff]
        %v934 = vld [vmem:[%s902 + $0xf8] sm:$0xff]
        %v935 = vld [vmem:[%s902 + $0x100] sm:$0xff]
        %v936 = vld [vmem:[%s902 + $0x108] sm:$0xff]
        %v937 = vld [vmem:[%s902 + $0x110] sm:$0xff]
        %v938 = vld [vmem:[%s902 + $0x118] sm:$0xff]
        %v939 = vld [vmem:[%s902 + $0x120] sm:$0xff]
        %v940 = vld [vmem:[%s902 + $0x128] sm:$0xff]
        %v941 = vld [vmem:[%s902 + $0x130] sm:$0xff]
        %v942 = vld [vmem:[%s902 + $0x138] sm:$0xff]
        %v943 = vld [vmem:[%s902 + $0x140] sm:$0xff]
        %v944 = vld [vmem:[%s902 + $0x148] sm:$0xff]
        %v945 = vld [vmem:[%s902 + $0x150] sm:$0xff]
        %v946 = vld [vmem:[%s902 + $0x158] sm:$0xff]
        %v947 = vld [vmem:[%s902 + $0x160] sm:$0xff]
        %v948 = vld [vmem:[%s902 + $0x168] sm:$0xff]
        %v949 = vld [vmem:[%s902 + $0x170] sm:$0xff]
        %v950 = vld [vmem:[%s902 + $0x178] sm:$0xff]
        %v951 = vld [vmem:[%s902 + $0x180] sm:$0xff]
        %v952 = vld [vmem:[%s902 + $0x188] sm:$0xff]
        %v953 = vld [vmem:[%s902 + $0x190] sm:$0xff]
        %v954 = vld [vmem:[%s902 + $0x198] sm:$0xff]
        %v955 = vld [vmem:[%s902 + $0x1a0] sm:$0xff]
        %v956 = vld [vmem:[%s902 + $0x1a8] sm:$0xff]
        %v957 = vld [vmem:[%s902 + $0x1b0] sm:$0xff]
        %v958 = vld [vmem:[%s902 + $0x1b8] sm:$0xff]
        %v959 = vld [vmem:[%s902 + $0x1c0] sm:$0xff]
        %v960 = vld [vmem:[%s902 + $0x1c8] sm:$0xff]
        %v961 = vld [vmem:[%s902 + $0x1d0] sm:$0xff]
        %v962 = vld [vmem:[%s902 + $0x1d8] sm:$0xff]
        %v963 = vld [vmem:[%s902 + $0x1e0] sm:$0xff]
        %v964 = vld [vmem:[%s902 + $0x1e8] sm:$0xff]
        %v965 = vld [vmem:[%s902 + $0x1f0] sm:$0xff]
        %v966 = vld [vmem:[%s902 + $0x1f8] sm:$0xff]
        %v967 = vld [vmem:[#allocation4] sm:$0xff]
        %v968 = vld [vmem:[#allocation4 + $0x8] sm:$0xff]
        %v969 = vld [vmem:[#allocation4 + $0x10] sm:$0xff]
        %v970 = vld [vmem:[#allocation4 + $0x18] sm:$0xff]
        %v971 = vld [vmem:[#allocation4 + $0x20] sm:$0xff]
        %v972 = vld [vmem:[#allocation4 + $0x28] sm:$0xff]
        %v973 = vld [vmem:[#allocation4 + $0x30] sm:$0xff]
        %v974 = vld [vmem:[#allocation4 + $0x38] sm:$0xff]
        %v975 = vld [vmem:[#allocation4 + $0x40] sm:$0xff]
        %v976 = vld [vmem:[#allocation4 + $0x48] sm:$0xff]
        %v977 = vld [vmem:[#allocation4 + $0x50] sm:$0xff]
        %v978 = vld [vmem:[#allocation4 + $0x58] sm:$0xff]
        %v979 = vld [vmem:[#allocation4 + $0x60] sm:$0xff]
        %v980 = vld [vmem:[#allocation4 + $0x68] sm:$0xff]
        %v981 = vld [vmem:[#allocation4 + $0x70] sm:$0xff]
        %v982 = vld [vmem:[#allocation4 + $0x78] sm:$0xff]
        %v983 = vld [vmem:[#allocation4 + $0x80] sm:$0xff]
        %v984 = vld [vmem:[#allocation4 + $0x88] sm:$0xff]
        %v985 = vld [vmem:[#allocation4 + $0x90] sm:$0xff]
        %v986 = vld [vmem:[#allocation4 + $0x98] sm:$0xff]
        %v987 = vld [vmem:[#allocation4 + $0xa0] sm:$0xff]
        %v988 = vld [vmem:[#allocation4 + $0xa8] sm:$0xff]
        %v989 = vld [vmem:[#allocation4 + $0xb0] sm:$0xff]
        %v990 = vld [vmem:[#allocation4 + $0xb8] sm:$0xff]
        %v991 = vld [vmem:[#allocation4 + $0xc0] sm:$0xff]
        %v992 = vld [vmem:[#allocation4 + $0xc8] sm:$0xff]
        %v993 = vld [vmem:[#allocation4 + $0xd0] sm:$0xff]
        %v994 = vld [vmem:[#allocation4 + $0xd8] sm:$0xff]
        %v995 = vld [vmem:[#allocation4 + $0xe0] sm:$0xff]
        %v996 = vld [vmem:[#allocation4 + $0xe8] sm:$0xff]
        %v997 = vld [vmem:[#allocation4 + $0xf0] sm:$0xff]
        %v998 = vld [vmem:[#allocation4 + $0xf8] sm:$0xff]
        %999 = vmatprep.subr.bf16.mxu0 0
        %1000 = vmatpush1.bf16.msra.mxu0 %v967
        %1001 = vmatprep.subr.bf16.mxu0 0
        %1002 = vmatpush1.bf16.msra.mxu0 %v968
        %1003 = vmatprep.subr.bf16.mxu0 0
        %1004 = vmatpush1.bf16.msra.mxu0 %v969
        %1005 = vmatprep.subr.bf16.mxu0 0
        %1006 = vmatpush1.bf16.msra.mxu0 %v970
        %1007 = vmatprep.subr.bf16.mxu0 0
        %1008 = vmatpush1.bf16.msra.mxu0 %v971
        %1009 = vmatprep.subr.bf16.mxu0 0
        %1010 = vmatpush1.bf16.msra.mxu0 %v972
        %1011 = vmatprep.subr.bf16.mxu0 0
        %1012 = vmatpush1.bf16.msra.mxu0 %v973
        %1013 = vmatprep.subr.bf16.mxu0 0
        %1014 = vmatpush1.bf16.msra.mxu0 %v974
        %1015 = vmatprep.subr.bf16.mxu0 0
        %1016 = vmatpush1.bf16.msra.mxu0 %v975
        %1017 = vmatprep.subr.bf16.mxu0 0
        %1018 = vmatpush1.bf16.msra.mxu0 %v976
        %1019 = vmatprep.subr.bf16.mxu0 0
        %1020 = vmatpush1.bf16.msra.mxu0 %v977
        %1021 = vmatprep.subr.bf16.mxu0 0
        %1022 = vmatpush1.bf16.msra.mxu0 %v978
        %1023 = vmatprep.subr.bf16.mxu0 0
        %1024 = vmatpush1.bf16.msra.mxu0 %v979
        %1025 = vmatprep.subr.bf16.mxu0 0
        %1026 = vmatpush1.bf16.msra.mxu0 %v980
        %1027 = vmatprep.subr.bf16.mxu0 0
        %1028 = vmatpush1.bf16.msra.mxu0 %v981
        %1029 = vmatprep.subr.bf16.mxu0 0
        %1030 = vmatpush1.bf16.msra.mxu0 %v982
        %1031 = vmatprep.mubr.bf16.mxu0 %v904
        %1032 = vmatmul.mubr.bf16.gmra.mrb[0].mxu0 %v903
        %v1033 = vpop.f32.mrb[0].mxu0
        %v1034 = vadd.f32 0.0, %v1033
        %v1035 = vpop.f32.mrb[0].mxu0
        %v1036 = vpop.f32.mrb[0].mxu0
        %v1037 = vadd.f32 0.0, %v1036
        %v1038 = vpop.f32.mrb[0].mxu0
        %1039 = vmatprep.mubr.bf16.mxu0 %v908
        %1040 = vmatmul.mubr.bf16.gmra.mrb[0].mxu0 %v907
        %v1041 = vpop.f32.mrb[0].mxu0
        %v1042 = vadd.f32 0.0, %v1041
        %v1043 = vpop.f32.mrb[0].mxu0
        %v1044 = vpop.f32.mrb[0].mxu0
        %v1045 = vadd.f32 0.0, %v1044
        %v1046 = vpop.f32.mrb[0].mxu0
        %1047 = vmatprep.mubr.bf16.mxu0 %v912
        %1048 = vmatmul.mubr.bf16.gmra.mrb[0].mxu0 %v911
        %v1049 = vpop.f32.mrb[0].mxu0
        %v1050 = vadd.f32 0.0, %v1049
        %v1051 = vpop.f32.mrb[0].mxu0
        %v1052 = vpop.f32.mrb[0].mxu0
        %v1053 = vadd.f32 0.0, %v1052
        %v1054 = vpop.f32.mrb[0].mxu0
        %1055 = vmatprep.mubr.bf16.mxu0 %v916
        %1056 = vmatmul.mubr.bf16.gmra.mrb[0].mxu0 %v915
        %v1057 = vpop.f32.mrb[0].mxu0
        %v1058 = vadd.f32 0.0, %v1057
        %v1059 = vpop.f32.mrb[0].mxu0
        %v1060 = vpop.f32.mrb[0].mxu0
        %v1061 = vadd.f32 0.0, %v1060
        %v1062 = vpop.f32.mrb[0].mxu0
        %1063 = vmatprep.mubr.bf16.mxu0 %v920
        %1064 = vmatmul.mubr.bf16.gmra.mrb[0].mxu0 %v919
        %v1065 = vpop.f32.mrb[0].mxu0
        %v1066 = vadd.f32 0.0, %v1065
        %v1067 = vpop.f32.mrb[0].mxu0
        %v1068 = vpop.f32.mrb[0].mxu0
        %v1069 = vadd.f32 0.0, %v1068
        %v1070 = vpop.f32.mrb[0].mxu0
        %1071 = vmatprep.mubr.bf16.mxu0 %v924
        %1072 = vmatmul.mubr.bf16.gmra.mrb[0].mxu0 %v923
        %v1073 = vpop.f32.mrb[0].mxu0
        %v1074 = vadd.f32 0.0, %v1073
        %v1075 = vpop.f32.mrb[0].mxu0
        %v1076 = vpop.f32.mrb[0].mxu0
        %v1077 = vadd.f32 0.0, %v1076
        %v1078 = vpop.f32.mrb[0].mxu0
        %1079 = vmatprep.mubr.bf16.mxu0 %v928
        %1080 = vmatmul.mubr.bf16.gmra.mrb[0].mxu0 %v927
        %v1081 = vpop.f32.mrb[0].mxu0
        %v1082 = vadd.f32 0.0, %v1081
        %v1083 = vpop.f32.mrb[0].mxu0
        %v1084 = vpop.f32.mrb[0].mxu0
        %v1085 = vadd.f32 0.0, %v1084
        %v1086 = vpop.f32.mrb[0].mxu0
        %1087 = vmatprep.mubr.bf16.mxu0 %v932
        %1088 = vmatmul.mubr.bf16.gmra.mrb[0].mxu0 %v931
        %v1089 = vpop.f32.mrb[0].mxu0
        %v1090 = vadd.f32 0.0, %v1089
        %v1091 = vpop.f32.mrb[0].mxu0
        %v1092 = vpop.f32.mrb[0].mxu0
        %v1093 = vadd.f32 0.0, %v1092
        %v1094 = vpop.f32.mrb[0].mxu0
        %1095 = vmatprep.mubr.bf16.mxu0 %v936
        %1096 = vmatmul.mubr.bf16.gmra.mrb[0].mxu0 %v935
        %v1097 = vpop.f32.mrb[0].mxu0
        %v1098 = vadd.f32 0.0, %v1097
        %v1099 = vpop.f32.mrb[0].mxu0
        %v1100 = vpop.f32.mrb[0].mxu0
        %v1101 = vadd.f32 0.0, %v1100
        %v1102 = vpop.f32.mrb[0].mxu0
        %1103 = vmatprep.mubr.bf16.mxu0 %v940
        %1104 = vmatmul.mubr.bf16.gmra.mrb[0].mxu0 %v939
        %v1105 = vpop.f32.mrb[0].mxu0
        %v1106 = vadd.f32 0.0, %v1105
        %v1107 = vpop.f32.mrb[0].mxu0
        %v1108 = vpop.f32.mrb[0].mxu0
        %v1109 = vadd.f32 0.0, %v1108
        %v1110 = vpop.f32.mrb[0].mxu0
        %1111 = vmatprep.mubr.bf16.mxu0 %v944
        %1112 = vmatmul.mubr.bf16.gmra.mrb[0].mxu0 %v943
        %v1113 = vpop.f32.mrb[0].mxu0
        %v1114 = vadd.f32 0.0, %v1113
        %v1115 = vpop.f32.mrb[0].mxu0
        %v1116 = vpop.f32.mrb[0].mxu0
        %v1117 = vadd.f32 0.0, %v1116
        %v1118 = vpop.f32.mrb[0].mxu0
        %1119 = vmatprep.mubr.bf16.mxu0 %v948
        %1120 = vmatmul.mubr.bf16.gmra.mrb[0].mxu0 %v947
        %v1121 = vpop.f32.mrb[0].mxu0
        %v1122 = vadd.f32 0.0, %v1121
        %v1123 = vpop.f32.mrb[0].mxu0
        %v1124 = vpop.f32.mrb[0].mxu0
        %v1125 = vadd.f32 0.0, %v1124
        %v1126 = vpop.f32.mrb[0].mxu0
        %1127 = vmatprep.mubr.bf16.mxu0 %v952
        %1128 = vmatmul.mubr.bf16.gmra.mrb[0].mxu0 %v951
        %v1129 = vpop.f32.mrb[0].mxu0
        %v1130 = vadd.f32 0.0, %v1129
        %v1131 = vpop.f32.mrb[0].mxu0
        %v1132 = vpop.f32.mrb[0].mxu0
        %v1133 = vadd.f32 0.0, %v1132
        %v1134 = vpop.f32.mrb[0].mxu0
        %1135 = vmatprep.mubr.bf16.mxu0 %v956
        %1136 = vmatmul.mubr.bf16.gmra.mrb[0].mxu0 %v955
        %v1137 = vpop.f32.mrb[0].mxu0
        %v1138 = vadd.f32 0.0, %v1137
        %v1139 = vpop.f32.mrb[0].mxu0
        %v1140 = vpop.f32.mrb[0].mxu0
        %v1141 = vadd.f32 0.0, %v1140
        %v1142 = vpop.f32.mrb[0].mxu0
        %1143 = vmatprep.mubr.bf16.mxu0 %v960
        %1144 = vmatmul.mubr.bf16.gmra.mrb[0].mxu0 %v959
        %v1145 = vpop.f32.mrb[0].mxu0
        %v1146 = vadd.f32 0.0, %v1145
        %v1147 = vpop.f32.mrb[0].mxu0
        %v1148 = vpop.f32.mrb[0].mxu0
        %v1149 = vadd.f32 0.0, %v1148
        %v1150 = vpop.f32.mrb[0].mxu0
        %1151 = vmatprep.mubr.bf16.mxu0 %v964
        %1152 = vmatmul.mubr.bf16.gmra.mrb[0].mxu0 %v963
        %v1153 = vpop.f32.mrb[0].mxu0
        %v1154 = vadd.f32 0.0, %v1153
        %v1155 = vpop.f32.mrb[0].mxu0
        %v1156 = vpop.f32.mrb[0].mxu0
        %v1157 = vadd.f32 0.0, %v1156
        %v1158 = vpop.f32.mrb[0].mxu0
        %1159 = vdwg.mxu0
        %1160 = vmatprep.subr.bf16.mxu0 0
        %1161 = vmatpush1.bf16.msra.mxu0 %v983
        %1162 = vmatprep.subr.bf16.mxu0 0
        %1163 = vmatpush1.bf16.msra.mxu0 %v984
        %1164 = vmatprep.subr.bf16.mxu0 0
        %1165 = vmatpush1.bf16.msra.mxu0 %v985
        %1166 = vmatprep.subr.bf16.mxu0 0
        %1167 = vmatpush1.bf16.msra.mxu0 %v986
        %1168 = vmatprep.subr.bf16.mxu0 0
        %1169 = vmatpush1.bf16.msra.mxu0 %v987
        %1170 = vmatprep.subr.bf16.mxu0 0
        %1171 = vmatpush1.bf16.msra.mxu0 %v988
        %1172 = vmatprep.subr.bf16.mxu0 0
        %1173 = vmatpush1.bf16.msra.mxu0 %v989
        %1174 = vmatprep.subr.bf16.mxu0 0
        %1175 = vmatpush1.bf16.msra.mxu0 %v990
        %1176 = vmatprep.subr.bf16.mxu0 0
        %1177 = vmatpush1.bf16.msra.mxu0 %v991
        %1178 = vmatprep.subr.bf16.mxu0 0
        %1179 = vmatpush1.bf16.msra.mxu0 %v992
        %1180 = vmatprep.subr.bf16.mxu0 0
        %1181 = vmatpush1.bf16.msra.mxu0 %v993
        %1182 = vmatprep.subr.bf16.mxu0 0
        %1183 = vmatpush1.bf16.msra.mxu0 %v994
        %1184 = vmatprep.subr.bf16.mxu0 0
        %1185 = vmatpush1.bf16.msra.mxu0 %v995
        %1186 = vmatprep.subr.bf16.mxu0 0
        %1187 = vmatpush1.bf16.msra.mxu0 %v996
        %1188 = vmatprep.subr.bf16.mxu0 0
        %1189 = vmatpush1.bf16.msra.mxu0 %v997
        %1190 = vmatprep.subr.bf16.mxu0 0
        %1191 = vmatpush1.bf16.msra.mxu0 %v998
        %1192 = vmatprep.mubr.bf16.mxu0 %v906
        %1193 = vmatmul.mubr.bf16.gmra.mrb[0].mxu0 %v905
        %v1194 = vpop.f32.mrb[0].mxu0
        %v1195 = vadd.f32 %v1034, %v1194
        %v1196 = vpop.f32.mrb[0].mxu0
        %v1197 = vpop.f32.mrb[0].mxu0
        %v1198 = vadd.f32 %v1037, %v1197
        %v1199 = vpop.f32.mrb[0].mxu0
        %1200 = vmatprep.mubr.bf16.mxu0 %v910
        %1201 = vmatmul.mubr.bf16.gmra.mrb[0].mxu0 %v909
        %v1202 = vpop.f32.mrb[0].mxu0
        %v1203 = vadd.f32 %v1042, %v1202
        %v1204 = vpop.f32.mrb[0].mxu0
        %v1205 = vpop.f32.mrb[0].mxu0
        %v1206 = vadd.f32 %v1045, %v1205
        %v1207 = vpop.f32.mrb[0].mxu0
        %1208 = vmatprep.mubr.bf16.mxu0 %v914
        %1209 = vmatmul.mubr.bf16.gmra.mrb[0].mxu0 %v913
        %v1210 = vpop.f32.mrb[0].mxu0
        %v1211 = vadd.f32 %v1050, %v1210
        %v1212 = vpop.f32.mrb[0].mxu0
        %v1213 = vpop.f32.mrb[0].mxu0
        %v1214 = vadd.f32 %v1053, %v1213
        %v1215 = vpop.f32.mrb[0].mxu0
        %1216 = vmatprep.mubr.bf16.mxu0 %v918
        %1217 = vmatmul.mubr.bf16.gmra.mrb[0].mxu0 %v917
        %v1218 = vpop.f32.mrb[0].mxu0
        %v1219 = vadd.f32 %v1058, %v1218
        %v1220 = vpop.f32.mrb[0].mxu0
        %v1221 = vpop.f32.mrb[0].mxu0
        %v1222 = vadd.f32 %v1061, %v1221
        %v1223 = vpop.f32.mrb[0].mxu0
        %1224 = vmatprep.mubr.bf16.mxu0 %v922
        %1225 = vmatmul.mubr.bf16.gmra.mrb[0].mxu0 %v921
        %v1226 = vpop.f32.mrb[0].mxu0
        %v1227 = vadd.f32 %v1066, %v1226
        %v1228 = vpop.f32.mrb[0].mxu0
        %v1229 = vpop.f32.mrb[0].mxu0
        %v1230 = vadd.f32 %v1069, %v1229
        %v1231 = vpop.f32.mrb[0].mxu0
        %1232 = vmatprep.mubr.bf16.mxu0 %v926
        %1233 = vmatmul.mubr.bf16.gmra.mrb[0].mxu0 %v925
        %v1234 = vpop.f32.mrb[0].mxu0
        %v1235 = vadd.f32 %v1074, %v1234
        %v1236 = vpop.f32.mrb[0].mxu0
        %v1237 = vpop.f32.mrb[0].mxu0
        %v1238 = vadd.f32 %v1077, %v1237
        %v1239 = vpop.f32.mrb[0].mxu0
        %1240 = vmatprep.mubr.bf16.mxu0 %v930
        %1241 = vmatmul.mubr.bf16.gmra.mrb[0].mxu0 %v929
        %v1242 = vpop.f32.mrb[0].mxu0
        %v1243 = vadd.f32 %v1082, %v1242
        %v1244 = vpop.f32.mrb[0].mxu0
        %v1245 = vpop.f32.mrb[0].mxu0
        %v1246 = vadd.f32 %v1085, %v1245
        %v1247 = vpop.f32.mrb[0].mxu0
        %1248 = vmatprep.mubr.bf16.mxu0 %v934
        %1249 = vmatmul.mubr.bf16.gmra.mrb[0].mxu0 %v933
        %v1250 = vpop.f32.mrb[0].mxu0
        %v1251 = vadd.f32 %v1090, %v1250
        %v1252 = vpop.f32.mrb[0].mxu0
        %v1253 = vpop.f32.mrb[0].mxu0
        %v1254 = vadd.f32 %v1093, %v1253
        %v1255 = vpop.f32.mrb[0].mxu0
        %1256 = vmatprep.mubr.bf16.mxu0 %v938
        %1257 = vmatmul.mubr.bf16.gmra.mrb[0].mxu0 %v937
        %v1258 = vpop.f32.mrb[0].mxu0
        %v1259 = vadd.f32 %v1098, %v1258
        %v1260 = vpop.f32.mrb[0].mxu0
        %v1261 = vpop.f32.mrb[0].mxu0
        %v1262 = vadd.f32 %v1101, %v1261
        %v1263 = vpop.f32.mrb[0].mxu0
        %1264 = vmatprep.mubr.bf16.mxu0 %v942
        %1265 = vmatmul.mubr.bf16.gmra.mrb[0].mxu0 %v941
        %v1266 = vpop.f32.mrb[0].mxu0
        %v1267 = vadd.f32 %v1106, %v1266
        %v1268 = vpop.f32.mrb[0].mxu0
        %v1269 = vpop.f32.mrb[0].mxu0
        %v1270 = vadd.f32 %v1109, %v1269
        %v1271 = vpop.f32.mrb[0].mxu0
        %1272 = vmatprep.mubr.bf16.mxu0 %v946
        %1273 = vmatmul.mubr.bf16.gmra.mrb[0].mxu0 %v945
        %v1274 = vpop.f32.mrb[0].mxu0
        %v1275 = vadd.f32 %v1114, %v1274
        %v1276 = vpop.f32.mrb[0].mxu0
        %v1277 = vpop.f32.mrb[0].mxu0
        %v1278 = vadd.f32 %v1117, %v1277
        %v1279 = vpop.f32.mrb[0].mxu0
        %1280 = vmatprep.mubr.bf16.mxu0 %v950
        %1281 = vmatmul.mubr.bf16.gmra.mrb[0].mxu0 %v949
        %v1282 = vpop.f32.mrb[0].mxu0
        %v1283 = vadd.f32 %v1122, %v1282
        %v1284 = vpop.f32.mrb[0].mxu0
        %v1285 = vpop.f32.mrb[0].mxu0
        %v1286 = vadd.f32 %v1125, %v1285
        %v1287 = vpop.f32.mrb[0].mxu0
        %1288 = vmatprep.mubr.bf16.mxu0 %v954
        %1289 = vmatmul.mubr.bf16.gmra.mrb[0].mxu0 %v953
        %v1290 = vpop.f32.mrb[0].mxu0
        %v1291 = vadd.f32 %v1130, %v1290
        %v1292 = vpop.f32.mrb[0].mxu0
        %v1293 = vpop.f32.mrb[0].mxu0
        %v1294 = vadd.f32 %v1133, %v1293
        %v1295 = vpop.f32.mrb[0].mxu0
        %1296 = vmatprep.mubr.bf16.mxu0 %v958
        %1297 = vmatmul.mubr.bf16.gmra.mrb[0].mxu0 %v957
        %v1298 = vpop.f32.mrb[0].mxu0
        %v1299 = vadd.f32 %v1138, %v1298
        %v1300 = vpop.f32.mrb[0].mxu0
        %v1301 = vpop.f32.mrb[0].mxu0
        %v1302 = vadd.f32 %v1141, %v1301
        %v1303 = vpop.f32.mrb[0].mxu0
        %1304 = vmatprep.mubr.bf16.mxu0 %v962
        %1305 = vmatmul.mubr.bf16.gmra.mrb[0].mxu0 %v961
        %v1306 = vpop.f32.mrb[0].mxu0
        %v1307 = vadd.f32 %v1146, %v1306
        %v1308 = vpop.f32.mrb[0].mxu0
        %v1309 = vpop.f32.mrb[0].mxu0
        %v1310 = vadd.f32 %v1149, %v1309
        %v1311 = vpop.f32.mrb[0].mxu0
        %1312 = vmatprep.mubr.bf16.mxu0 %v966
        %1313 = vmatmul.mubr.bf16.gmra.mrb[0].mxu0 %v965
        %v1314 = vpop.f32.mrb[0].mxu0
        %v1315 = vadd.f32 %v1154, %v1314
        %v1316 = vpop.f32.mrb[0].mxu0
        %v1317 = vpop.f32.mrb[0].mxu0
        %v1318 = vadd.f32 %v1157, %v1317
        %v1319 = vpop.f32.mrb[0].mxu0
        %1320 = vdwg.mxu0
        %v1321 = vld [vmem:[%s247] sm:$0x1]
        %v1323 = vlaneseq
        %v1324 = vshrl.u32 %v1323, 7
        %v1325 = vsub.s32 0, %v1324
        %v1326 = vrot.slane %v1321, %v1325
        %v1328 = vmul.f32 %v1195, %v1326
        %v1329 = vmul.f32 %v1198, %v1326
        %v1330 = vmul.f32 %v1203, %v1326
        %v1331 = vmul.f32 %v1206, %v1326
        %v1332 = vmul.f32 %v1211, %v1326
        %v1333 = vmul.f32 %v1214, %v1326
        %v1334 = vmul.f32 %v1219, %v1326
        %v1335 = vmul.f32 %v1222, %v1326
        %v1336 = vmul.f32 %v1227, %v1326
        %v1337 = vmul.f32 %v1230, %v1326
        %v1338 = vmul.f32 %v1235, %v1326
        %v1339 = vmul.f32 %v1238, %v1326
        %v1340 = vmul.f32 %v1243, %v1326
        %v1341 = vmul.f32 %v1246, %v1326
        %v1342 = vmul.f32 %v1251, %v1326
        %v1343 = vmul.f32 %v1254, %v1326
        %v1344 = vmul.f32 %v1259, %v1326
        %v1345 = vmul.f32 %v1262, %v1326
        %v1346 = vmul.f32 %v1267, %v1326
        %v1347 = vmul.f32 %v1270, %v1326
        %v1348 = vmul.f32 %v1275, %v1326
        %v1349 = vmul.f32 %v1278, %v1326
        %v1350 = vmul.f32 %v1283, %v1326
        %v1351 = vmul.f32 %v1286, %v1326
        %v1352 = vmul.f32 %v1291, %v1326
        %v1353 = vmul.f32 %v1294, %v1326
        %v1354 = vmul.f32 %v1299, %v1326
        %v1355 = vmul.f32 %v1302, %v1326
        %v1356 = vmul.f32 %v1307, %v1326
        %v1357 = vmul.f32 %v1310, %v1326
        %v1358 = vmul.f32 %v1315, %v1326
        %v1359 = vmul.f32 %v1318, %v1326
        %v1360 = vld [vmem:[%s255] sm:$0x1]
        %v1362 = vlaneseq
        %v1363 = vshrl.u32 %v1362, 7
        %v1364 = vsub.s32 0, %v1363
        %v1365 = vrot.slane %v1360, %v1364
        %v1367 = vadd.f32 %v1328, %v1365
        %v1368 = vadd.f32 %v1329, %v1365
        %v1369 = vadd.f32 %v1330, %v1365
        %v1370 = vadd.f32 %v1331, %v1365
        %v1371 = vadd.f32 %v1332, %v1365
        %v1372 = vadd.f32 %v1333, %v1365
        %v1373 = vadd.f32 %v1334, %v1365
        %v1374 = vadd.f32 %v1335, %v1365
        %v1375 = vadd.f32 %v1336, %v1365
        %v1376 = vadd.f32 %v1337, %v1365
        %v1377 = vadd.f32 %v1338, %v1365
        %v1378 = vadd.f32 %v1339, %v1365
        %v1379 = vadd.f32 %v1340, %v1365
        %v1380 = vadd.f32 %v1341, %v1365
        %v1381 = vadd.f32 %v1342, %v1365
        %v1382 = vadd.f32 %v1343, %v1365
        %v1383 = vadd.f32 %v1344, %v1365
        %v1384 = vadd.f32 %v1345, %v1365
        %v1385 = vadd.f32 %v1346, %v1365
        %v1386 = vadd.f32 %v1347, %v1365
        %v1387 = vadd.f32 %v1348, %v1365
        %v1388 = vadd.f32 %v1349, %v1365
        %v1389 = vadd.f32 %v1350, %v1365
        %v1390 = vadd.f32 %v1351, %v1365
        %v1391 = vadd.f32 %v1352, %v1365
        %v1392 = vadd.f32 %v1353, %v1365
        %v1393 = vadd.f32 %v1354, %v1365
        %v1394 = vadd.f32 %v1355, %v1365
        %v1395 = vadd.f32 %v1356, %v1365
        %v1396 = vadd.f32 %v1357, %v1365
        %v1397 = vadd.f32 %v1358, %v1365
        %v1398 = vadd.f32 %v1359, %v1365
        %p1399 = scmp.lt.s32.totalorder %s28, 2
        // Predicated region
        $region61: #{tpu_custom_call.1} parent=35 // pred_check
          %p1400 = pneg %p1399
        $region62: #{tpu_custom_call.1} parent=35 // pred_check_branch
          %1402 = sbr.rel (%p1400) target = $region64
        $region63: #{tpu_custom_call.1} parent=35 // pred_region
          %v1403 = vmax.f32 %v1367, 0.0
          %v1404 = vmax.f32 %v1368, 0.0
          %v1405 = vmax.f32 %v1369, 0.0
          %v1406 = vmax.f32 %v1370, 0.0
          %v1407 = vmax.f32 %v1371, 0.0
          %v1408 = vmax.f32 %v1372, 0.0
          %v1409 = vmax.f32 %v1373, 0.0
          %v1410 = vmax.f32 %v1374, 0.0
          %v1411 = vmax.f32 %v1375, 0.0
          %v1412 = vmax.f32 %v1376, 0.0
          %v1413 = vmax.f32 %v1377, 0.0
          %v1414 = vmax.f32 %v1378, 0.0
          %v1415 = vmax.f32 %v1379, 0.0
          %v1416 = vmax.f32 %v1380, 0.0
          %v1417 = vmax.f32 %v1381, 0.0
          %v1418 = vmax.f32 %v1382, 0.0
          %v1419 = vmax.f32 %v1383, 0.0
          %v1420 = vmax.f32 %v1384, 0.0
          %v1421 = vmax.f32 %v1385, 0.0
          %v1422 = vmax.f32 %v1386, 0.0
          %v1423 = vmax.f32 %v1387, 0.0
          %v1424 = vmax.f32 %v1388, 0.0
          %v1425 = vmax.f32 %v1389, 0.0
          %v1426 = vmax.f32 %v1390, 0.0
          %v1427 = vmax.f32 %v1391, 0.0
          %v1428 = vmax.f32 %v1392, 0.0
          %v1429 = vmax.f32 %v1393, 0.0
          %v1430 = vmax.f32 %v1394, 0.0
          %v1431 = vmax.f32 %v1395, 0.0
          %v1432 = vmax.f32 %v1396, 0.0
          %v1433 = vmax.f32 %v1397, 0.0
          %v1434 = vmax.f32 %v1398, 0.0
          %v1435 = vpack.c.bf16 %v1404, %v1403
          %v1436 = vpack.c.bf16 %v1406, %v1405
          %v1437 = vpack.c.bf16 %v1408, %v1407
          %v1438 = vpack.c.bf16 %v1410, %v1409
          %v1439 = vpack.c.bf16 %v1412, %v1411
          %v1440 = vpack.c.bf16 %v1414, %v1413
          %v1441 = vpack.c.bf16 %v1416, %v1415
          %v1442 = vpack.c.bf16 %v1418, %v1417
          %v1443 = vpack.c.bf16 %v1420, %v1419
          %v1444 = vpack.c.bf16 %v1422, %v1421
          %v1445 = vpack.c.bf16 %v1424, %v1423
          %v1446 = vpack.c.bf16 %v1426, %v1425
          %v1447 = vpack.c.bf16 %v1428, %v1427
          %v1448 = vpack.c.bf16 %v1430, %v1429
          %v1449 = vpack.c.bf16 %v1432, %v1431
          %v1450 = vpack.c.bf16 %v1434, %v1433
          %s1451 = smul.addr %s898, 8
          %s1452 = scalar_lea.vmem [#allocation3], %s1451
          %1453 = vst [vmem:[%s1452] sm:$0xff] %v1435
          %1454 = vst [vmem:[%s1452 + $0x8] sm:$0xff] %v1436
          %1455 = vst [vmem:[%s1452 + $0x10] sm:$0xff] %v1437
          %1456 = vst [vmem:[%s1452 + $0x18] sm:$0xff] %v1438
          %1457 = vst [vmem:[%s1452 + $0x20] sm:$0xff] %v1439
          %1458 = vst [vmem:[%s1452 + $0x28] sm:$0xff] %v1440
          %1459 = vst [vmem:[%s1452 + $0x30] sm:$0xff] %v1441
          %1460 = vst [vmem:[%s1452 + $0x38] sm:$0xff] %v1442
          %1461 = vst [vmem:[%s1452 + $0x40] sm:$0xff] %v1443
          %1462 = vst [vmem:[%s1452 + $0x48] sm:$0xff] %v1444
          %1463 = vst [vmem:[%s1452 + $0x50] sm:$0xff] %v1445
          %1464 = vst [vmem:[%s1452 + $0x58] sm:$0xff] %v1446
          %1465 = vst [vmem:[%s1452 + $0x60] sm:$0xff] %v1447
          %1466 = vst [vmem:[%s1452 + $0x68] sm:$0xff] %v1448
          %1467 = vst [vmem:[%s1452 + $0x70] sm:$0xff] %v1449
          %1468 = vst [vmem:[%s1452 + $0x78] sm:$0xff] %v1450
        $region64: #{tpu_custom_call.1} parent=35 // pred_fallthru
          _
        %p1469 = scmp.eq.s32.totalorder %s28, 2
        // Predicated region
        $region65: #{tpu_custom_call.1} parent=35 // pred_check
          %p1470 = pneg %p1469
        $region66: #{tpu_custom_call.1} parent=35 // pred_check_branch
          %1472 = sbr.rel (%p1470) target = $region68
        $region67: #{tpu_custom_call.1} parent=35 // pred_region
          // Predicated region
          $region69: #{tpu_custom_call.1} parent=67 // pred_check
            %p1473 = pneg %p285
          $region70: #{tpu_custom_call.1} parent=67 // pred_check_branch
            %1475 = sbr.rel (%p1473) target = $region72
          $region71: #{tpu_custom_call.1} parent=67 // pred_region
            %1476 = vst [vmem:[#allocation12] sm:$0xff] 0.0
          $region72: #{tpu_custom_call.1} parent=67 // pred_fallthru
            _
          %v1477 = vld [vmem:[#allocation12] sm:$0xff]
          %s1478 = sshra.s32 %s897, 7
          %s1479 = sand.u32 %s897, 127
          %s1480 = smul.addr %s1478, 4
          %s1481 = scalar_lea.vmem %s5, %s1480
          %v1482 = vld [vmem:[%s1481] sm:$0xff]
          %v1483 = vpack.c.bf16 %v1368, %v1367
          %v1484 = vpack.c.bf16 %v1370, %v1369
          %v1485 = vpack.c.bf16 %v1372, %v1371
          %v1486 = vpack.c.bf16 %v1374, %v1373
          %v1487 = vpack.c.bf16 %v1376, %v1375
          %v1488 = vpack.c.bf16 %v1378, %v1377
          %v1489 = vpack.c.bf16 %v1380, %v1379
          %v1490 = vpack.c.bf16 %v1382, %v1381
          %v1491 = vpack.c.bf16 %v1384, %v1383
          %v1492 = vpack.c.bf16 %v1386, %v1385
          %v1493 = vpack.c.bf16 %v1388, %v1387
          %v1494 = vpack.c.bf16 %v1390, %v1389
          %v1495 = vpack.c.bf16 %v1392, %v1391
          %v1496 = vpack.c.bf16 %v1394, %v1393
          %v1497 = vpack.c.bf16 %v1396, %v1395
          %v1498 = vpack.c.bf16 %v1398, %v1397
          %v1500 = vunpack.c.l.b16 %v1482
          %v1501 = vunpack.c.h.b16 %v1482
          %v1502 = vpack.c.b16 %v1500, %v1500
          %v1503 = vpack.c.b16 %v1501, %v1501
          %1506 = vmatprep.subr.bf16.mxu0 0
          %1507 = vmatpush1.bf16.msra.mxu0 %v1483
          %1508 = vmatprep.subr.bf16.mxu0 0
          %1509 = vmatpush1.bf16.msra.mxu0 %v1484
          %1510 = vmatprep.subr.bf16.mxu0 0
          %1511 = vmatpush1.bf16.msra.mxu0 %v1485
          %1512 = vmatprep.subr.bf16.mxu0 0
          %1513 = vmatpush1.bf16.msra.mxu0 %v1486
          %1514 = vmatprep.subr.bf16.mxu0 0
          %1515 = vmatpush1.bf16.msra.mxu0 %v1487
          %1516 = vmatprep.subr.bf16.mxu0 0
          %1517 = vmatpush1.bf16.msra.mxu0 %v1488
          %1518 = vmatprep.subr.bf16.mxu0 0
          %1519 = vmatpush1.bf16.msra.mxu0 %v1489
          %1520 = vmatprep.subr.bf16.mxu0 0
          %1521 = vmatpush1.bf16.msra.mxu0 %v1490
          %1522 = vmatprep.subr.bf16.mxu0 0
          %1523 = vmatpush1.bf16.msra.mxu0 %v1491
          %1524 = vmatprep.subr.bf16.mxu0 0
          %1525 = vmatpush1.bf16.msra.mxu0 %v1492
          %1526 = vmatprep.subr.bf16.mxu0 0
          %1527 = vmatpush1.bf16.msra.mxu0 %v1493
          %1528 = vmatprep.subr.bf16.mxu0 0
          %1529 = vmatpush1.bf16.msra.mxu0 %v1494
          %1530 = vmatprep.subr.bf16.mxu0 0
          %1531 = vmatpush1.bf16.msra.mxu0 %v1495
          %1532 = vmatprep.subr.bf16.mxu0 0
          %1533 = vmatpush1.bf16.msra.mxu0 %v1496
          %1534 = vmatprep.subr.bf16.mxu0 0
          %1535 = vmatpush1.bf16.msra.mxu0 %v1497
          %1536 = vmatprep.subr.bf16.mxu0 0
          %1537 = vmatpush1.bf16.msra.mxu0 %v1498
          %1538 = vmatprep.mubr.bf16.mxu0 %v1503
          %1539 = vmatmul.mubr.bf16.gmra.mrb[0].mxu0 %v1502
          %v1540 = vpop.f32.mrb[0].mxu0
          %v1541 = vadd.f32 0.0, %v1540
          %v1542 = vpop.f32.mrb[0].mxu0
          %v1543 = vpop.f32.mrb[0].mxu0
          %v1544 = vpop.f32.mrb[0].mxu0
          %1545 = vdwg.mxu0
          %v1546 = vadd.f32 %v1477, %v1541
          %1547 = vst [vmem:[#allocation12] sm:$0xff] %v1546
        $region68: #{tpu_custom_call.1} parent=35 // pred_fallthru
          _
        // Predicated region
        $region73: #{tpu_custom_call.1} parent=35 // pred_check
          %p1548 = pneg %p148
        $region74: #{tpu_custom_call.1} parent=35 // pred_check_branch
          %1550 = sbr.rel (%p1548) target = $region76
        $region75: #{tpu_custom_call.1} parent=35 // pred_region
          %s1552 = ssub.s32 128, 128
          %1553 = vsyncadd [#allocation8], %s1552
          %s1555 = sshll.u32 [#allocation12], 4
          %s1556 = int_to_ptr.vmem [resolvable:$true] %s1555
          %1558 = dma.vmem_to_hbm [thread:$0]  %s1556, 128, %s6, [#allocation8]
        $region76: #{tpu_custom_call.1} parent=35 // pred_fallthru
          _
        // Predicated region
        $region77: #{tpu_custom_call.1} parent=35 // pred_check
          %p1559 = pneg %p148
        $region78: #{tpu_custom_call.1} parent=35 // pred_check_branch
          %1561 = sbr.rel (%p1559) target = $region80
        $region79: #{tpu_custom_call.1} parent=35 // pred_region
          %1562 = dma.done [#allocation8], 128
        $region80: #{tpu_custom_call.1} parent=35 // pred_fallthru
          _
      $region36: #{tpu_custom_call.1} parent=5 // pred_fallthru
        _
      %p1563 = scmp.le.s32.totalorder 2, %s19
      // Predicated region
      $region81: #{tpu_custom_call.1} parent=5 // pred_check
        %p1564 = pneg %p1563
      $region82: #{tpu_custom_call.1} parent=5 // pred_check_branch
        %1566 = sbr.rel (%p1564) target = $region84
      $region83: #{tpu_custom_call.1} parent=5 // pred_region
        %s1567 = ssub.s32 %s19, 2
      $region84: #{tpu_custom_call.1} parent=5 // pred_fallthru
        _
    $region6: #{tpu_custom_call.1} parent=1 // loop_footer
      %s23 = sadd.s32 1, %s19
    $region7: #{tpu_custom_call.1} parent=1 // loop_footer_branch
      %18 = sbr.rel target = $region3
    $region8: #{tpu_custom_call.1} parent=1 // loop_exit
      _
    %1568 = vsyncpa [#allocation7], 1
    %s1569 = scalar_lea.sflag [#allocation7], 1
    %1570 = vsyncpa %s1569, 1
    %1571 = vsyncpa [#allocation10], 1
    %s1572 = scalar_lea.sflag [#allocation10], 1
    %1573 = vsyncpa %s1572, 1
    %1574 = vsyncpa [#allocation8], 1
    %s1575 = scalar_lea.sflag [#allocation8], 1
    %1576 = vsyncpa %s1575, 1
  %1577 = vsyncmov [#allocation5]
  %s1578 = vpop.sfrf %1577
  %p1579 = scmp.eq.s32.totalorder %s1578, 0
  %p1580 = pneg %p1579
  %1582 = shalt.err (%p1580)
  %s1583 = scalar_lea.sflag [#allocation5], 1
  %1584 = vsyncmov %s1583
  %s1585 = vpop.sfrf %1584
  %p1586 = scmp.eq.s32.totalorder %s1585, 0
  %p1587 = pneg %p1586
  %1589 = shalt.err (%p1587)

</llo_original>
